<compile_context>
chip_gen: v7x
topology: tpu7x:2x2x1
jax: 0.10.0
libtpu: 0.0.40
codegen_flags: <defaults>
</compile_context>

<pallas_src>
import functools

import numpy as np

import jax
import jax.numpy as jnp
from jax.experimental import pallas as pl
from jax.experimental.pallas import tpu as pltpu

P = 128            # padded hidden width (lane-dense: multiple of 128)
TB = 256           # batch rows per grid step (sublane-dense; sweep 256-512)
SMALL_BATCH = 64   # below this the fixed pallas_call overhead dominates -> XLA path


def _generator_kernel(n_layers, x_ref, w0_ref, wr_ref, b_ref, o_ref):
    """x_ref: (TB, d0) f32 (row-padded only); w0_ref: (d0, P) bf16;
    wr_ref: (NL-1, P, P) bf16; b_ref: (NL, P) f32; o_ref: (TB, P) f32.

    Layer 0          : h = tanh(x @ W0 + b0)
    Layers 1..NL-2   : h = tanh(h @ Wi + bi)
    Layer NL-1       : out = h @ W_fold + b_fold   (folded final Linear +
                       external matmul + double bias; no activation)
    Padded weight rows/cols are zero, so padded lanes stay zero.
    """
    h = jnp.dot(x_ref[...].astype(jnp.bfloat16), w0_ref[...],
                preferred_element_type=jnp.float32) + b_ref[pl.ds(0, 1), :]
    if n_layers > 1:
        h = jnp.tanh(h)
    for i in range(1, n_layers):
        h = jnp.dot(h.astype(jnp.bfloat16), wr_ref[i - 1],
                    preferred_element_type=jnp.float32) + b_ref[pl.ds(i, 1), :]
        if i < n_layers - 1:
            h = jnp.tanh(h)
    o_ref[...] = h


def pack_generator_params(layer_params, weight, bias):
    """One-time parameter packing (outside the hot path).

    layer_params: list of (W [out,in], b [out]) for the nn.Sequential Linears.
    weight: (D0, D0) external matmul weight; bias: (D0,) external bias.

    The last Linear has no activation, so it is folded with the external
    matmul and the double bias:
        W_fold = W_last.T @ weight
        b_fold = b_last @ weight + 2*bias
    Returns:
        w0 : (d0, P)      bf16   first-layer weight (transposed, lane-padded)
        wr : (NL-1, P, P) bf16   remaining layer weights (transposed, padded)
        bp : (NL, P)      f32    biases (last one is the folded bias)
    """
    W_last, b_last = layer_params[-1]
    W_last = jnp.asarray(W_last, jnp.float32)
    b_last = jnp.asarray(b_last, jnp.float32)
    weight = jnp.asarray(weight, jnp.float32)
    bias = jnp.asarray(bias, jnp.float32)

    w_fold = W_last.T @ weight
    b_fold = b_last @ weight + 2.0 * bias

    mats = [jnp.asarray(W, jnp.float32).T for W, _ in layer_params[:-1]] + [w_fold]
    vecs = [jnp.asarray(b, jnp.float32) for _, b in layer_params[:-1]] + [b_fold]

    nl = len(mats)
    d0 = mats[0].shape[0]

    w0 = np.zeros((d0, P), np.float32)
    w0[:, :mats[0].shape[1]] = np.asarray(mats[0])

    wr = np.zeros((nl - 1, P, P), np.float32)
    for i in range(1, nl):
        m = np.asarray(mats[i])
        wr[i - 1, :m.shape[0], :m.shape[1]] = m

    bp = np.zeros((nl, P), np.float32)
    for i, v in enumerate(vecs):
        v = np.asarray(v)
        bp[i, :v.shape[0]] = v

    return (jnp.asarray(w0, jnp.bfloat16),
            jnp.asarray(wr, jnp.bfloat16),
            jnp.asarray(bp, jnp.float32))


def _xla_forward(x2, w0, wr, bp, nl):
    """Fused plain-XLA path for tiny batches (same numerics as the kernel)."""
    h = jnp.dot(x2.astype(jnp.bfloat16), w0,
                preferred_element_type=jnp.float32) + bp[0]
    if nl > 1:
        h = jnp.tanh(h)
    for i in range(1, nl):
        h = jnp.dot(h.astype(jnp.bfloat16), wr[i - 1],
                    preferred_element_type=jnp.float32) + bp[i]
        if i < nl - 1:
            h = jnp.tanh(h)
    return h


@jax.jit
def generator_forward(x, w0, wr, bp):
    """x: (B, D0) or (D0,) f32; returns output with the same leading shape."""
    squeeze = (x.ndim == 1)
    x2 = (x.reshape(1, -1) if squeeze else x).astype(jnp.float32)
    B, d0 = x2.shape
    nl = bp.shape[0]

    # Tiny-batch / single-vector route: skip launch + parameter-DMA overhead.
    if B < SMALL_BATCH:
        out = _xla_forward(x2, w0, wr, bp, nl)[:, :d0]
        return out[0] if squeeze else out

    b_pad = pl.cdiv(B, TB) * TB
    xr = x2 if b_pad == B else jnp.pad(x2, ((0, b_pad - B), (0, 0)))
    num_steps = b_pad // TB

    param_bytes = w0.size * 2 + wr.size * 2 + bp.size * 4
    cost = pl.CostEstimate(
        flops=2 * b_pad * P * P * nl,
        transcendentals=b_pad * P * (nl - 1),
        bytes_accessed=param_bytes + xr.size * 4 + b_pad * P * 4)

    kernel = functools.partial(_generator_kernel, nl)
    out = pl.pallas_call(
        kernel,
        out_shape=jax.ShapeDtypeStruct((b_pad, P), jnp.float32),
        grid=(num_steps,),
        in_specs=[
            pl.BlockSpec((TB, d0), lambda i: (i, 0)),         # activations stream
            pl.BlockSpec((d0, P), lambda i: (0, 0)),          # first-layer W (resident)
            pl.BlockSpec((nl - 1, P, P), lambda i: (0, 0, 0)),  # remaining Ws (resident)
            pl.BlockSpec((nl, P), lambda i: (0, 0)),          # biases (resident)
        ],
        out_specs=pl.BlockSpec((TB, P), lambda i: (i, 0)),    # lane-dense stores
        compiler_params=pltpu.CompilerParams(
            dimension_semantics=(
                ("parallel",) if num_steps >= 8 else ("arbitrary",))),
        cost_estimate=cost,
    )(xr, w0, wr, bp)

    out = out[:B, :d0]
    return out[0] if squeeze else out


if __name__ == "__main__":
    # Small config implied by G_model with model_flag=2:
    NAtom = 8
    Nlayer = 2
    increment = 8
    D0 = NAtom * 3  # 24

    # Linear layer dims: expand Nlayer times, shrink Nlayer times, final square Linear.
    dims = [D0]
    for _ in range(Nlayer):
        dims.append(dims[-1] + increment)
    for _ in range(Nlayer):
        dims.append(dims[-1] - increment)
    dims.append(dims[-1])  # final nn.Linear(inp_dim, inp_dim)
    # dims == [24, 32, 40, 32, 24, 24] -> 5 Linear layers

    key = jax.random.PRNGKey(0)
    layer_params = []
    for i in range(len(dims) - 1):
        key, kw, kb = jax.random.split(key, 3)
        fan_in, fan_out = dims[i], dims[i + 1]
        W = jax.random.normal(kw, (fan_out, fan_in), jnp.float32) * 0.1
        b = jax.random.normal(kb, (fan_out,), jnp.float32) * 0.1
        layer_params.append((W, b))

    key, kx, kw2, kb2 = jax.random.split(key, 4)
    B = 256  # batch of stacked Generator samples (amortizes launch/DMA overhead)
    x = jax.random.normal(kx, (B, D0), jnp.float32)            # RandomInput analogue
    weight = jax.random.normal(kw2, (D0, D0), jnp.float32) * 0.1
    bias = jax.random.normal(kb2, (D0,), jnp.float32) * 0.1

    # One-time parameter packing (transpose + pad + bf16 + fold final GEMM + 2*bias).
    w0, wr, bp = pack_generator_params(layer_params, weight, bias)

    out = jax.block_until_ready(generator_forward(x, w0, wr, bp))

    # Plain-JAX f32 reference (unfused torch semantics) for correctness checks.
    def ref_forward(xr):
        h = xr
        n = len(layer_params)
        for i, (W, b) in enumerate(layer_params):
            h = h @ W.T + b
            if i < n - 1:
                h = jnp.tanh(h)
        return h @ weight + bias + bias

    ref = ref_forward(x)
    assert out.shape == (B, D0)
    # Tolerance loosened vs. the f32 reference because weights are bf16 on the MXU.
    assert jnp.allclose(out, ref, atol=5e-2, rtol=5e-2), "batched mismatch vs reference"

    # Non-multiple-of-TB batch: exercises the row-padding + slicing path.
    outb = jax.block_until_ready(generator_forward(x[:100], w0, wr, bp))
    assert outb.shape == (100, D0)
    assert jnp.allclose(outb, ref[:100], atol=5e-2, rtol=5e-2), "row-padded mismatch"

    # Single-vector call (original torch semantics: 1-D input) -> XLA fallback path.
    out1 = jax.block_until_ready(generator_forward(x[0], w0, wr, bp))
    assert out1.shape == (D0,)
    assert jnp.allclose(out1, ref[0], atol=5e-2, rtol=5e-2), "1-D mismatch vs reference"

    # TODO(synk): Generator.train / DistancePenalty loop and the optimizer are
    # training-time host logic, not part of the forward hot path; not kernelized.
    print("KERNEL_OK")
</pallas_src>

<mosaic_0001>
module attributes {stable_mosaic.version = 11 : i64} {
  func.func @_generator_kernel(%arg0: i32, %arg1: memref<256x24xf32, #tpu.memory_space<vmem>>, %arg2: memref<24x128xbf16, #tpu.memory_space<vmem>>, %arg3: memref<4x128x128xbf16, #tpu.memory_space<vmem>>, %arg4: memref<5x128xf32, #tpu.memory_space<vmem>>, %arg5: memref<256x128xf32, #tpu.memory_space<vmem>>) attributes {dimension_semantics = [#tpu.dimension_semantics<arbitrary>], iteration_bounds = array<i64: 1>, scalar_prefetch = 0 : i64, scratch_operands = 0 : i64, tpu.core_type = #tpu.core_type<tc>, window_params = [{transform_indices = @transform_0, window_bounds = array<i64: 256, 24>}, {pipeline_mode = #tpu.pipeline_mode<synchronous>, transform_indices = @transform_1, window_bounds = array<i64: 24, 128>}, {pipeline_mode = #tpu.pipeline_mode<synchronous>, transform_indices = @transform_2, window_bounds = array<i64: 4, 128, 128>}, {pipeline_mode = #tpu.pipeline_mode<synchronous>, transform_indices = @transform_3, window_bounds = array<i64: 5, 128>}, {transform_indices = @transform_4, window_bounds = array<i64: 256, 128>}]} {
    %c0 = arith.constant 0 : index
    %c0_0 = arith.constant 0 : index
    %0 = vector.load %arg1[%c0, %c0_0] : memref<256x24xf32, #tpu.memory_space<vmem>>, vector<256x24xf32>
    %1 = arith.truncf %0 : vector<256x24xf32> to vector<256x24xbf16>
    %c0_1 = arith.constant 0 : index
    %c0_2 = arith.constant 0 : index
    %2 = vector.load %arg2[%c0_1, %c0_2] : memref<24x128xbf16, #tpu.memory_space<vmem>>, vector<24x128xbf16>
    %cst = arith.constant dense<0.000000e+00> : vector<256x128xf32>
    %3 = tpu.matmul %1, %2, %cst {dimension_numbers = #tpu.dot_dimension_numbers<[1], [0], [0], [1], [0, 0, 1, 1], [], []>} : vector<256x24xbf16>, vector<24x128xbf16>, vector<256x128xf32> -> vector<256x128xf32>
    %c0_3 = arith.constant 0 : index
    %c0_4 = arith.constant 0 : index
    %4 = vector.load %arg4[%c0_3, %c0_4] : memref<5x128xf32, #tpu.memory_space<vmem>>, vector<1x128xf32>
    %5 = vector.broadcast %4 : vector<1x128xf32> to vector<256x128xf32>
    %6 = arith.addf %3, %5 : vector<256x128xf32>
    %7 = math.tanh %6 : vector<256x128xf32>
    %8 = arith.truncf %7 : vector<256x128xf32> to vector<256x128xbf16>
    %c0_5 = arith.constant 0 : index
    %c0_6 = arith.constant 0 : index
    %c0_7 = arith.constant 0 : index
    %9 = vector.load %arg3[%c0_5, %c0_6, %c0_7] : memref<4x128x128xbf16, #tpu.memory_space<vmem>>, vector<1x128x128xbf16>
    %10 = vector.shape_cast %9 : vector<1x128x128xbf16> to vector<128x128xbf16>
    %cst_8 = arith.constant dense<0.000000e+00> : vector<256x128xf32>
    %11 = tpu.matmul %8, %10, %cst_8 {dimension_numbers = #tpu.dot_dimension_numbers<[1], [0], [0], [1], [0, 0, 1, 1], [], []>} : vector<256x128xbf16>, vector<128x128xbf16>, vector<256x128xf32> -> vector<256x128xf32>
    %c1 = arith.constant 1 : index
    %c0_9 = arith.constant 0 : index
    %12 = vector.load %arg4[%c1, %c0_9] : memref<5x128xf32, #tpu.memory_space<vmem>>, vector<1x128xf32>
    %13 = vector.broadcast %12 : vector<1x128xf32> to vector<256x128xf32>
    %14 = arith.addf %11, %13 : vector<256x128xf32>
    %15 = math.tanh %14 : vector<256x128xf32>
    %16 = arith.truncf %15 : vector<256x128xf32> to vector<256x128xbf16>
    %c1_10 = arith.constant 1 : index
    %c0_11 = arith.constant 0 : index
    %c0_12 = arith.constant 0 : index
    %17 = vector.load %arg3[%c1_10, %c0_11, %c0_12] : memref<4x128x128xbf16, #tpu.memory_space<vmem>>, vector<1x128x128xbf16>
    %18 = vector.shape_cast %17 : vector<1x128x128xbf16> to vector<128x128xbf16>
    %cst_13 = arith.constant dense<0.000000e+00> : vector<256x128xf32>
    %19 = tpu.matmul %16, %18, %cst_13 {dimension_numbers = #tpu.dot_dimension_numbers<[1], [0], [0], [1], [0, 0, 1, 1], [], []>} : vector<256x128xbf16>, vector<128x128xbf16>, vector<256x128xf32> -> vector<256x128xf32>
    %c2 = arith.constant 2 : index
    %c0_14 = arith.constant 0 : index
    %20 = vector.load %arg4[%c2, %c0_14] : memref<5x128xf32, #tpu.memory_space<vmem>>, vector<1x128xf32>
    %21 = vector.broadcast %20 : vector<1x128xf32> to vector<256x128xf32>
    %22 = arith.addf %19, %21 : vector<256x128xf32>
    %23 = math.tanh %22 : vector<256x128xf32>
    %24 = arith.truncf %23 : vector<256x128xf32> to vector<256x128xbf16>
    %c2_15 = arith.constant 2 : index
    %c0_16 = arith.constant 0 : index
    %c0_17 = arith.constant 0 : index
    %25 = vector.load %arg3[%c2_15, %c0_16, %c0_17] : memref<4x128x128xbf16, #tpu.memory_space<vmem>>, vector<1x128x128xbf16>
    %26 = vector.shape_cast %25 : vector<1x128x128xbf16> to vector<128x128xbf16>
    %cst_18 = arith.constant dense<0.000000e+00> : vector<256x128xf32>
    %27 = tpu.matmul %24, %26, %cst_18 {dimension_numbers = #tpu.dot_dimension_numbers<[1], [0], [0], [1], [0, 0, 1, 1], [], []>} : vector<256x128xbf16>, vector<128x128xbf16>, vector<256x128xf32> -> vector<256x128xf32>
    %c3 = arith.constant 3 : index
    %c0_19 = arith.constant 0 : index
    %28 = vector.load %arg4[%c3, %c0_19] : memref<5x128xf32, #tpu.memory_space<vmem>>, vector<1x128xf32>
    %29 = vector.broadcast %28 : vector<1x128xf32> to vector<256x128xf32>
    %30 = arith.addf %27, %29 : vector<256x128xf32>
    %31 = math.tanh %30 : vector<256x128xf32>
    %32 = arith.truncf %31 : vector<256x128xf32> to vector<256x128xbf16>
    %c3_20 = arith.constant 3 : index
    %c0_21 = arith.constant 0 : index
    %c0_22 = arith.constant 0 : index
    %33 = vector.load %arg3[%c3_20, %c0_21, %c0_22] : memref<4x128x128xbf16, #tpu.memory_space<vmem>>, vector<1x128x128xbf16>
    %34 = vector.shape_cast %33 : vector<1x128x128xbf16> to vector<128x128xbf16>
    %cst_23 = arith.constant dense<0.000000e+00> : vector<256x128xf32>
    %35 = tpu.matmul %32, %34, %cst_23 {dimension_numbers = #tpu.dot_dimension_numbers<[1], [0], [0], [1], [0, 0, 1, 1], [], []>} : vector<256x128xbf16>, vector<128x128xbf16>, vector<256x128xf32> -> vector<256x128xf32>
    %c4 = arith.constant 4 : index
    %c0_24 = arith.constant 0 : index
    %36 = vector.load %arg4[%c4, %c0_24] : memref<5x128xf32, #tpu.memory_space<vmem>>, vector<1x128xf32>
    %37 = vector.broadcast %36 : vector<1x128xf32> to vector<256x128xf32>
    %38 = arith.addf %35, %37 : vector<256x128xf32>
    %c0_25 = arith.constant 0 : index
    %c0_26 = arith.constant 0 : index
    %39 = vector.load %arg5[%c0_25, %c0_26] : memref<256x128xf32, #tpu.memory_space<vmem>>, vector<256x128xf32>
    tpu.vector_store %arg5[%c0_25, %c0_26], %38 {strides = array<i32>} : memref<256x128xf32, #tpu.memory_space<vmem>>, vector<256x128xf32>,
    return
  }
  func.func @transform_0(%arg0: i32) -> (i32, i32) {
    %c0_i32 = arith.constant 0 : i32
    %c0_i32_0 = arith.constant 0 : i32
    return %arg0, %c0_i32 : i32, i32
  }
  func.func @transform_1(%arg0: i32) -> (i32, i32) {
    %c0_i32 = arith.constant 0 : i32
    %c0_i32_0 = arith.constant 0 : i32
    %c0_i32_1 = arith.constant 0 : i32
    return %c0_i32, %c0_i32_0 : i32, i32
  }
  func.func @transform_2(%arg0: i32) -> (i32, i32, i32) {
    %c0_i32 = arith.constant 0 : i32
    %c0_i32_0 = arith.constant 0 : i32
    %c0_i32_1 = arith.constant 0 : i32
    %c0_i32_2 = arith.constant 0 : i32
    return %c0_i32, %c0_i32_0, %c0_i32_1 : i32, i32, i32
  }
  func.func @transform_3(%arg0: i32) -> (i32, i32) {
    %c0_i32 = arith.constant 0 : i32
    %c0_i32_0 = arith.constant 0 : i32
    %c0_i32_1 = arith.constant 0 : i32
    return %c0_i32, %c0_i32_0 : i32, i32
  }
  func.func @transform_4(%arg0: i32) -> (i32, i32) {
    %c0_i32 = arith.constant 0 : i32
    %c0_i32_0 = arith.constant 0 : i32
    return %arg0, %c0_i32 : i32, i32
  }
}

</mosaic_0001>

<llo_original>
// kernel: generator_forward.1
$region0: #{generator_forward.1}
  #allocation0 [shape = 'u32[]', space=smem, size = 0x4, offset = 0x4, fixed_abs, tag = 'smem constant byte address 0x4 - core index']
  #allocation1 [shape = 'u32[144,128]{1,0:T(1,128)}', space=vmem, size = 0x12000, scoped, tag = 'internal scratch']
  %s0 = inlined_call_operand.vmem [shape: f32[256,24], index: 0, kind: input, shape index: {}]
  %s1 = inlined_call_operand.vmem [shape: bf16[24,128], index: 1, kind: input, shape index: {}]
  %s2 = inlined_call_operand.vmem [shape: bf16[4,128,128], index: 2, kind: input, shape index: {}]
  %s3 = inlined_call_operand.vmem [shape: f32[5,128], index: 3, kind: input, shape index: {}]
  %s4 = inlined_call_operand.vmem [shape: f32[256,128], index: 4, kind: output, shape index: {}]
  %s5 = sld [smem:[#allocation0]]
  $region26: #{generator_forward.1} parent=0
    _
  %s7 = ssub.s32 1, %s5
  %s8 = scalar_select 0, %s7, %s5
  // Predicated region
  $region2: #{generator_forward.1} parent=0 // pred_check
    _
  $region3: #{generator_forward.1} parent=0 // pred_check_branch
    %10 = sbr.rel (0) target = $region5
  $region4: #{generator_forward.1} parent=0 // pred_region
    _
  $region5: #{generator_forward.1} parent=0 // pred_fallthru
    _
  // Predicated region
  $region6: #{generator_forward.1} parent=0 // pred_check
    _
  $region7: #{generator_forward.1} parent=0 // pred_check_branch
    %12 = sbr.rel (0) target = $region9
  $region8: #{generator_forward.1} parent=0 // pred_region
    _
  $region9: #{generator_forward.1} parent=0 // pred_fallthru
    _
  // Predicated region
  $region10: #{generator_forward.1} parent=0 // pred_check
    _
  $region11: #{generator_forward.1} parent=0 // pred_check_branch
    %14 = sbr.rel (0) target = $region13
  $region12: #{generator_forward.1} parent=0 // pred_region
    _
  $region13: #{generator_forward.1} parent=0 // pred_fallthru
    _
  // Predicated region
  $region14: #{generator_forward.1} parent=0 // pred_check
    _
  $region15: #{generator_forward.1} parent=0 // pred_check_branch
    %16 = sbr.rel (0) target = $region17
  $region16: #{generator_forward.1} parent=0 // pred_region
    _
  $region17: #{generator_forward.1} parent=0 // pred_fallthru
    _
  %v18 = vld [vmem:[%s0] sm:$0xff]
  %v19 = vld [vmem:[%s0 + $0x8] sm:$0xff]
  %v20 = vld [vmem:[%s0 + $0x10] sm:$0xff]
  %v21 = vld [vmem:[%s0 + $0x18] sm:$0xff]
  %v22 = vld [vmem:[%s0 + $0x20] sm:$0xff]
  %v23 = vld [vmem:[%s0 + $0x28] sm:$0xff]
  %v24 = vld [vmem:[%s0 + $0x30] sm:$0xff]
  %v25 = vld [vmem:[%s0 + $0x38] sm:$0xff]
  %v26 = vld [vmem:[%s0 + $0x40] sm:$0xff]
  %v27 = vld [vmem:[%s0 + $0x48] sm:$0xff]
  %v28 = vld [vmem:[%s0 + $0x50] sm:$0xff]
  %v29 = vld [vmem:[%s0 + $0x58] sm:$0xff]
  %v30 = vld [vmem:[%s0 + $0x60] sm:$0xff]
  %v31 = vld [vmem:[%s0 + $0x68] sm:$0xff]
  %v32 = vld [vmem:[%s0 + $0x70] sm:$0xff]
  %v33 = vld [vmem:[%s0 + $0x78] sm:$0xff]
  %v34 = vld [vmem:[%s0 + $0x80] sm:$0xff]
  %v35 = vld [vmem:[%s0 + $0x88] sm:$0xff]
  %v36 = vld [vmem:[%s0 + $0x90] sm:$0xff]
  %v37 = vld [vmem:[%s0 + $0x98] sm:$0xff]
  %v38 = vld [vmem:[%s0 + $0xa0] sm:$0xff]
  %v39 = vld [vmem:[%s0 + $0xa8] sm:$0xff]
  %v40 = vld [vmem:[%s0 + $0xb0] sm:$0xff]
  %v41 = vld [vmem:[%s0 + $0xb8] sm:$0xff]
  %v42 = vld [vmem:[%s0 + $0xc0] sm:$0xff]
  %v43 = vld [vmem:[%s0 + $0xc8] sm:$0xff]
  %v44 = vld [vmem:[%s0 + $0xd0] sm:$0xff]
  %v45 = vld [vmem:[%s0 + $0xd8] sm:$0xff]
  %v46 = vld [vmem:[%s0 + $0xe0] sm:$0xff]
  %v47 = vld [vmem:[%s0 + $0xe8] sm:$0xff]
  %v48 = vld [vmem:[%s0 + $0xf0] sm:$0xff]
  %v49 = vld [vmem:[%s0 + $0xf8] sm:$0xff]
  %v50 = vpack.c.bf16 %v19, %v18
  %v51 = vpack.c.bf16 %v21, %v20
  %v52 = vpack.c.bf16 %v23, %v22
  %v53 = vpack.c.bf16 %v25, %v24
  %v54 = vpack.c.bf16 %v27, %v26
  %v55 = vpack.c.bf16 %v29, %v28
  %v56 = vpack.c.bf16 %v31, %v30
  %v57 = vpack.c.bf16 %v33, %v32
  %v58 = vpack.c.bf16 %v35, %v34
  %v59 = vpack.c.bf16 %v37, %v36
  %v60 = vpack.c.bf16 %v39, %v38
  %v61 = vpack.c.bf16 %v41, %v40
  %v62 = vpack.c.bf16 %v43, %v42
  %v63 = vpack.c.bf16 %v45, %v44
  %v64 = vpack.c.bf16 %v47, %v46
  %v65 = vpack.c.bf16 %v49, %v48
  %v66 = vld [vmem:[%s1] sm:$0xf]
  %v67 = vld [vmem:[%s1 + $0x4] sm:$0xf]
  %v68 = vld [vmem:[%s1 + $0x8] sm:$0xf]
  %v69 = vld [vmem:[%s3] sm:$0x1]
  %v70 = vlaneseq
  %v71 = vshrl.u32 %v70, 7
  %v72 = vsub.s32 0, %v71
  %v73 = vrot.slane %v69, %v72
  %v77 = vunpack.c.l.b16 %v66
  %v78 = vunpack.c.l.b16 %v67
  %v79 = vunpack.c.l.b16 %v68
  %v80 = vpack.c.b16 %v78, %v77
  %v81 = vpack.c.b16 %v79, %v79
  %vm83 = vcmask 195584
  %v85 = vsel %vm83, %v50, 0
  %v88 = vsel %vm83, %v51, 0
  %v91 = vsel %vm83, %v52, 0
  %v94 = vsel %vm83, %v53, 0
  %v97 = vsel %vm83, %v54, 0
  %v100 = vsel %vm83, %v55, 0
  %v103 = vsel %vm83, %v56, 0
  %v106 = vsel %vm83, %v57, 0
  %v109 = vsel %vm83, %v58, 0
  %v112 = vsel %vm83, %v59, 0
  %v115 = vsel %vm83, %v60, 0
  %v118 = vsel %vm83, %v61, 0
  %v121 = vsel %vm83, %v62, 0
  %v124 = vsel %vm83, %v63, 0
  %v127 = vsel %vm83, %v64, 0
  %v130 = vsel %vm83, %v65, 0
  %vm132 = vcmask 1043456
  %v134 = vsel %vm132, %v81, 0
  %136 = vmatprep.subr.bf16.mxu0 0
  %137 = vmatpush1.bf16.msra.mxu0 %v80
  %138 = vmatprep.subr.bf16.mxu0 0
  %139 = vmatpush1.bf16.msra.mxu0 %v134
  %140 = vmatprep.subr.bf16.mxu0 0
  %141 = vmatpush1.bf16.msra.mxu0 0
  %142 = vmatprep.subr.bf16.mxu0 0
  %143 = vmatpush1.bf16.msra.mxu0 0
  %144 = vmatprep.subr.bf16.mxu0 0
  %145 = vmatpush1.bf16.msra.mxu0 0
  %146 = vmatprep.subr.bf16.mxu0 0
  %147 = vmatpush1.bf16.msra.mxu0 0
  %148 = vmatprep.subr.bf16.mxu0 0
  %149 = vmatpush1.bf16.msra.mxu0 0
  %150 = vmatprep.subr.bf16.mxu0 0
  %151 = vmatpush1.bf16.msra.mxu0 0
  %152 = vmatprep.subr.bf16.mxu0 0
  %153 = vmatpush1.bf16.msra.mxu0 0
  %154 = vmatprep.subr.bf16.mxu0 0
  %155 = vmatpush1.bf16.msra.mxu0 0
  %156 = vmatprep.subr.bf16.mxu0 0
  %157 = vmatpush1.bf16.msra.mxu0 0
  %158 = vmatprep.subr.bf16.mxu0 0
  %159 = vmatpush1.bf16.msra.mxu0 0
  %160 = vmatprep.subr.bf16.mxu0 0
  %161 = vmatpush1.bf16.msra.mxu0 0
  %162 = vmatprep.subr.bf16.mxu0 0
  %163 = vmatpush1.bf16.msra.mxu0 0
  %164 = vmatprep.subr.bf16.mxu0 0
  %165 = vmatpush1.bf16.msra.mxu0 0
  %166 = vmatprep.subr.bf16.mxu0 0
  %167 = vmatpush1.bf16.msra.mxu0 0
  %168 = vmatprep.mubr.bf16.mxu0 0
  %169 = vmatmul.mubr.bf16.gmra.mrb[0].mxu0 %v85
  %v170 = vpop.f32.mrb[0].mxu0
  %v171 = vadd.f32 %v73, %v170
  %v172 = vpop.f32.mrb[0].mxu0
  %v173 = vpop.f32.mrb[0].mxu0
  %v174 = vadd.f32 %v73, %v173
  %v175 = vpop.f32.mrb[0].mxu0
  %176 = vmatprep.mubr.bf16.mxu0 0
  %177 = vmatmul.mubr.bf16.gmra.mrb[0].mxu0 %v88
  %v178 = vpop.f32.mrb[0].mxu0
  %v179 = vadd.f32 %v73, %v178
  %v180 = vpop.f32.mrb[0].mxu0
  %v181 = vpop.f32.mrb[0].mxu0
  %v182 = vadd.f32 %v73, %v181
  %v183 = vpop.f32.mrb[0].mxu0
  %184 = vmatprep.mubr.bf16.mxu0 0
  %185 = vmatmul.mubr.bf16.gmra.mrb[0].mxu0 %v91
  %v186 = vpop.f32.mrb[0].mxu0
  %v187 = vadd.f32 %v73, %v186
  %v188 = vpop.f32.mrb[0].mxu0
  %v189 = vpop.f32.mrb[0].mxu0
  %v190 = vadd.f32 %v73, %v189
  %v191 = vpop.f32.mrb[0].mxu0
  %192 = vmatprep.mubr.bf16.mxu0 0
  %193 = vmatmul.mubr.bf16.gmra.mrb[0].mxu0 %v94
  %v194 = vpop.f32.mrb[0].mxu0
  %v195 = vadd.f32 %v73, %v194
  %v196 = vpop.f32.mrb[0].mxu0
  %v197 = vpop.f32.mrb[0].mxu0
  %v198 = vadd.f32 %v73, %v197
  %v199 = vpop.f32.mrb[0].mxu0
  %200 = vmatprep.mubr.bf16.mxu0 0
  %201 = vmatmul.mubr.bf16.gmra.mrb[0].mxu0 %v97
  %v202 = vpop.f32.mrb[0].mxu0
  %v203 = vadd.f32 %v73, %v202
  %v204 = vpop.f32.mrb[0].mxu0
  %v205 = vpop.f32.mrb[0].mxu0
  %v206 = vadd.f32 %v73, %v205
  %v207 = vpop.f32.mrb[0].mxu0
  %208 = vmatprep.mubr.bf16.mxu0 0
  %209 = vmatmul.mubr.bf16.gmra.mrb[0].mxu0 %v100
  %v210 = vpop.f32.mrb[0].mxu0
  %v211 = vadd.f32 %v73, %v210
  %v212 = vpop.f32.mrb[0].mxu0
  %v213 = vpop.f32.mrb[0].mxu0
  %v214 = vadd.f32 %v73, %v213
  %v215 = vpop.f32.mrb[0].mxu0
  %216 = vmatprep.mubr.bf16.mxu0 0
  %217 = vmatmul.mubr.bf16.gmra.mrb[0].mxu0 %v103
  %v218 = vpop.f32.mrb[0].mxu0
  %v219 = vadd.f32 %v73, %v218
  %v220 = vpop.f32.mrb[0].mxu0
  %v221 = vpop.f32.mrb[0].mxu0
  %v222 = vadd.f32 %v73, %v221
  %v223 = vpop.f32.mrb[0].mxu0
  %224 = vmatprep.mubr.bf16.mxu0 0
  %225 = vmatmul.mubr.bf16.gmra.mrb[0].mxu0 %v106
  %v226 = vpop.f32.mrb[0].mxu0
  %v227 = vadd.f32 %v73, %v226
  %v228 = vpop.f32.mrb[0].mxu0
  %v229 = vpop.f32.mrb[0].mxu0
  %v230 = vadd.f32 %v73, %v229
  %v231 = vpop.f32.mrb[0].mxu0
  %232 = vmatprep.mubr.bf16.mxu0 0
  %233 = vmatmul.mubr.bf16.gmra.mrb[0].mxu0 %v109
  %v234 = vpop.f32.mrb[0].mxu0
  %v235 = vadd.f32 %v73, %v234
  %v236 = vpop.f32.mrb[0].mxu0
  %v237 = vpop.f32.mrb[0].mxu0
  %v238 = vadd.f32 %v73, %v237
  %v239 = vpop.f32.mrb[0].mxu0
  %240 = vmatprep.mubr.bf16.mxu0 0
  %241 = vmatmul.mubr.bf16.gmra.mrb[0].mxu0 %v112
  %v242 = vpop.f32.mrb[0].mxu0
  %v243 = vadd.f32 %v73, %v242
  %v244 = vpop.f32.mrb[0].mxu0
  %v245 = vpop.f32.mrb[0].mxu0
  %v246 = vadd.f32 %v73, %v245
  %v247 = vpop.f32.mrb[0].mxu0
  %248 = vmatprep.mubr.bf16.mxu0 0
  %249 = vmatmul.mubr.bf16.gmra.mrb[0].mxu0 %v115
  %v250 = vpop.f32.mrb[0].mxu0
  %v251 = vadd.f32 %v73, %v250
  %v252 = vpop.f32.mrb[0].mxu0
  %v253 = vpop.f32.mrb[0].mxu0
  %v254 = vadd.f32 %v73, %v253
  %v255 = vpop.f32.mrb[0].mxu0
  %256 = vmatprep.mubr.bf16.mxu0 0
  %257 = vmatmul.mubr.bf16.gmra.mrb[0].mxu0 %v118
  %v258 = vpop.f32.mrb[0].mxu0
  %v259 = vadd.f32 %v73, %v258
  %v260 = vpop.f32.mrb[0].mxu0
  %v261 = vpop.f32.mrb[0].mxu0
  %v262 = vadd.f32 %v73, %v261
  %v263 = vpop.f32.mrb[0].mxu0
  %264 = vmatprep.mubr.bf16.mxu0 0
  %265 = vmatmul.mubr.bf16.gmra.mrb[0].mxu0 %v121
  %v266 = vpop.f32.mrb[0].mxu0
  %v267 = vadd.f32 %v73, %v266
  %v268 = vpop.f32.mrb[0].mxu0
  %v269 = vpop.f32.mrb[0].mxu0
  %v270 = vadd.f32 %v73, %v269
  %v271 = vpop.f32.mrb[0].mxu0
  %272 = vmatprep.mubr.bf16.mxu0 0
  %273 = vmatmul.mubr.bf16.gmra.mrb[0].mxu0 %v124
  %v274 = vpop.f32.mrb[0].mxu0
  %v275 = vadd.f32 %v73, %v274
  %v276 = vpop.f32.mrb[0].mxu0
  %v277 = vpop.f32.mrb[0].mxu0
  %v278 = vadd.f32 %v73, %v277
  %v279 = vpop.f32.mrb[0].mxu0
  %280 = vmatprep.mubr.bf16.mxu0 0
  %281 = vmatmul.mubr.bf16.gmra.mrb[0].mxu0 %v127
  %v282 = vpop.f32.mrb[0].mxu0
  %v283 = vadd.f32 %v73, %v282
  %v284 = vpop.f32.mrb[0].mxu0
  %v285 = vpop.f32.mrb[0].mxu0
  %v286 = vadd.f32 %v73, %v285
  %v287 = vpop.f32.mrb[0].mxu0
  %288 = vmatprep.mubr.bf16.mxu0 0
  %289 = vmatmul.mubr.bf16.gmra.mrb[0].mxu0 %v130
  %v290 = vpop.f32.mrb[0].mxu0
  %v291 = vadd.f32 %v73, %v290
  %v292 = vpop.f32.mrb[0].mxu0
  %v293 = vpop.f32.mrb[0].mxu0
  %v294 = vadd.f32 %v73, %v293
  %v295 = vpop.f32.mrb[0].mxu0
  %296 = vdwg.mxu0
  %v297 = vtanh.pop %v171
  %v298 = vtanh.pop %v174
  %v299 = vtanh.pop %v179
  %v300 = vtanh.pop %v182
  %v301 = vtanh.pop %v187
  %v302 = vtanh.pop %v190
  %v303 = vtanh.pop %v195
  %v304 = vtanh.pop %v198
  %v305 = vtanh.pop %v203
  %v306 = vtanh.pop %v206
  %v307 = vtanh.pop %v211
  %v308 = vtanh.pop %v214
  %v309 = vtanh.pop %v219
  %v310 = vtanh.pop %v222
  %v311 = vtanh.pop %v227
  %v312 = vtanh.pop %v230
  %v313 = vtanh.pop %v235
  %v314 = vtanh.pop %v238
  %v315 = vtanh.pop %v243
  %v316 = vtanh.pop %v246
  %v317 = vtanh.pop %v251
  %v318 = vtanh.pop %v254
  %v319 = vtanh.pop %v259
  %v320 = vtanh.pop %v262
  %v321 = vtanh.pop %v267
  %v322 = vtanh.pop %v270
  %v323 = vtanh.pop %v275
  %v324 = vtanh.pop %v278
  %v325 = vtanh.pop %v283
  %v326 = vtanh.pop %v286
  %v327 = vtanh.pop %v291
  %v328 = vtanh.pop %v294
  %v329 = vpack.c.bf16 %v298, %v297
  %v330 = vpack.c.bf16 %v300, %v299
  %v331 = vpack.c.bf16 %v302, %v301
  %v332 = vpack.c.bf16 %v304, %v303
  %v333 = vpack.c.bf16 %v306, %v305
  %v334 = vpack.c.bf16 %v308, %v307
  %v335 = vpack.c.bf16 %v310, %v309
  %v336 = vpack.c.bf16 %v312, %v311
  %v337 = vpack.c.bf16 %v314, %v313
  %v338 = vpack.c.bf16 %v316, %v315
  %v339 = vpack.c.bf16 %v318, %v317
  %v340 = vpack.c.bf16 %v320, %v319
  %v341 = vpack.c.bf16 %v322, %v321
  %v342 = vpack.c.bf16 %v324, %v323
  %v343 = vpack.c.bf16 %v326, %v325
  %v344 = vpack.c.bf16 %v328, %v327
  %v345 = vld [vmem:[%s2] sm:$0xf]
  %v346 = vld [vmem:[%s2 + $0x4] sm:$0xf]
  %v347 = vld [vmem:[%s2 + $0x8] sm:$0xf]
  %v348 = vld [vmem:[%s2 + $0xc] sm:$0xf]
  %v349 = vld [vmem:[%s2 + $0x10] sm:$0xf]
  %v350 = vld [vmem:[%s2 + $0x14] sm:$0xf]
  %v351 = vld [vmem:[%s2 + $0x18] sm:$0xf]
  %v352 = vld [vmem:[%s2 + $0x1c] sm:$0xf]
  %v353 = vld [vmem:[%s2 + $0x20] sm:$0xf]
  %v354 = vld [vmem:[%s2 + $0x24] sm:$0xf]
  %v355 = vld [vmem:[%s2 + $0x28] sm:$0xf]
  %v356 = vld [vmem:[%s2 + $0x2c] sm:$0xf]
  %v357 = vld [vmem:[%s2 + $0x30] sm:$0xf]
  %v358 = vld [vmem:[%s2 + $0x34] sm:$0xf]
  %v359 = vld [vmem:[%s2 + $0x38] sm:$0xf]
  %v360 = vld [vmem:[%s2 + $0x3c] sm:$0xf]
  %v361 = vld [vmem:[%s3 + $0x1] sm:$0x1]
  %v362 = vlaneseq
  %v363 = vshrl.u32 %v362, 7
  %v364 = vsub.s32 0, %v363
  %v365 = vrot.slane %v361, %v364
  %v382 = vunpack.c.l.b16 %v345
  %v383 = vunpack.c.l.b16 %v346
  %v384 = vunpack.c.l.b16 %v347
  %v385 = vunpack.c.l.b16 %v348
  %v386 = vunpack.c.l.b16 %v349
  %v387 = vunpack.c.l.b16 %v350
  %v388 = vunpack.c.l.b16 %v351
  %v389 = vunpack.c.l.b16 %v352
  %v390 = vunpack.c.l.b16 %v353
  %v391 = vunpack.c.l.b16 %v354
  %v392 = vunpack.c.l.b16 %v355
  %v393 = vunpack.c.l.b16 %v356
  %v394 = vunpack.c.l.b16 %v357
  %v395 = vunpack.c.l.b16 %v358
  %v396 = vunpack.c.l.b16 %v359
  %v397 = vunpack.c.l.b16 %v360
  %v398 = vpack.c.b16 %v383, %v382
  %v399 = vpack.c.b16 %v385, %v384
  %v400 = vpack.c.b16 %v387, %v386
  %v401 = vpack.c.b16 %v389, %v388
  %v402 = vpack.c.b16 %v391, %v390
  %v403 = vpack.c.b16 %v393, %v392
  %v404 = vpack.c.b16 %v395, %v394
  %v405 = vpack.c.b16 %v397, %v396
  %414 = vmatprep.subr.bf16.mxu0 0
  %415 = vmatpush1.bf16.msra.mxu0 %v398
  %416 = vmatprep.subr.bf16.mxu0 0
  %417 = vmatpush1.bf16.msra.mxu0 %v399
  %418 = vmatprep.subr.bf16.mxu0 0
  %419 = vmatpush1.bf16.msra.mxu0 %v400
  %420 = vmatprep.subr.bf16.mxu0 0
  %421 = vmatpush1.bf16.msra.mxu0 %v401
  %422 = vmatprep.subr.bf16.mxu0 0
  %423 = vmatpush1.bf16.msra.mxu0 %v402
  %424 = vmatprep.subr.bf16.mxu0 0
  %425 = vmatpush1.bf16.msra.mxu0 %v403
  %426 = vmatprep.subr.bf16.mxu0 0
  %427 = vmatpush1.bf16.msra.mxu0 %v404
  %428 = vmatprep.subr.bf16.mxu0 0
  %429 = vmatpush1.bf16.msra.mxu0 %v405
  %430 = vmatprep.subr.bf16.mxu0 0
  %431 = vmatpush1.bf16.msra.mxu0 0
  %432 = vmatprep.subr.bf16.mxu0 0
  %433 = vmatpush1.bf16.msra.mxu0 0
  %434 = vmatprep.subr.bf16.mxu0 0
  %435 = vmatpush1.bf16.msra.mxu0 0
  %436 = vmatprep.subr.bf16.mxu0 0
  %437 = vmatpush1.bf16.msra.mxu0 0
  %438 = vmatprep.subr.bf16.mxu0 0
  %439 = vmatpush1.bf16.msra.mxu0 0
  %440 = vmatprep.subr.bf16.mxu0 0
  %441 = vmatpush1.bf16.msra.mxu0 0
  %442 = vmatprep.subr.bf16.mxu0 0
  %443 = vmatpush1.bf16.msra.mxu0 0
  %444 = vmatprep.subr.bf16.mxu0 0
  %445 = vmatpush1.bf16.msra.mxu0 0
  %446 = vmatprep.mubr.bf16.mxu0 0
  %447 = vmatmul.mubr.bf16.gmra.mrb[0].mxu0 %v329
  %v448 = vpop.f32.mrb[0].mxu0
  %v449 = vadd.f32 %v365, %v448
  %v450 = vpop.f32.mrb[0].mxu0
  %v451 = vpop.f32.mrb[0].mxu0
  %v452 = vadd.f32 %v365, %v451
  %v453 = vpop.f32.mrb[0].mxu0
  %454 = vmatprep.mubr.bf16.mxu0 0
  %455 = vmatmul.mubr.bf16.gmra.mrb[0].mxu0 %v330
  %v456 = vpop.f32.mrb[0].mxu0
  %v457 = vadd.f32 %v365, %v456
  %v458 = vpop.f32.mrb[0].mxu0
  %v459 = vpop.f32.mrb[0].mxu0
  %v460 = vadd.f32 %v365, %v459
  %v461 = vpop.f32.mrb[0].mxu0
  %462 = vmatprep.mubr.bf16.mxu0 0
  %463 = vmatmul.mubr.bf16.gmra.mrb[0].mxu0 %v331
  %v464 = vpop.f32.mrb[0].mxu0
  %v465 = vadd.f32 %v365, %v464
  %v466 = vpop.f32.mrb[0].mxu0
  %v467 = vpop.f32.mrb[0].mxu0
  %v468 = vadd.f32 %v365, %v467
  %v469 = vpop.f32.mrb[0].mxu0
  %470 = vmatprep.mubr.bf16.mxu0 0
  %471 = vmatmul.mubr.bf16.gmra.mrb[0].mxu0 %v332
  %v472 = vpop.f32.mrb[0].mxu0
  %v473 = vadd.f32 %v365, %v472
  %v474 = vpop.f32.mrb[0].mxu0
  %v475 = vpop.f32.mrb[0].mxu0
  %v476 = vadd.f32 %v365, %v475
  %v477 = vpop.f32.mrb[0].mxu0
  %478 = vmatprep.mubr.bf16.mxu0 0
  %479 = vmatmul.mubr.bf16.gmra.mrb[0].mxu0 %v333
  %v480 = vpop.f32.mrb[0].mxu0
  %v481 = vadd.f32 %v365, %v480
  %v482 = vpop.f32.mrb[0].mxu0
  %v483 = vpop.f32.mrb[0].mxu0
  %v484 = vadd.f32 %v365, %v483
  %v485 = vpop.f32.mrb[0].mxu0
  %486 = vmatprep.mubr.bf16.mxu0 0
  %487 = vmatmul.mubr.bf16.gmra.mrb[0].mxu0 %v334
  %v488 = vpop.f32.mrb[0].mxu0
  %v489 = vadd.f32 %v365, %v488
  %v490 = vpop.f32.mrb[0].mxu0
  %v491 = vpop.f32.mrb[0].mxu0
  %v492 = vadd.f32 %v365, %v491
  %v493 = vpop.f32.mrb[0].mxu0
  %494 = vmatprep.mubr.bf16.mxu0 0
  %495 = vmatmul.mubr.bf16.gmra.mrb[0].mxu0 %v335
  %v496 = vpop.f32.mrb[0].mxu0
  %v497 = vadd.f32 %v365, %v496
  %v498 = vpop.f32.mrb[0].mxu0
  %v499 = vpop.f32.mrb[0].mxu0
  %v500 = vadd.f32 %v365, %v499
  %v501 = vpop.f32.mrb[0].mxu0
  %502 = vmatprep.mubr.bf16.mxu0 0
  %503 = vmatmul.mubr.bf16.gmra.mrb[0].mxu0 %v336
  %v504 = vpop.f32.mrb[0].mxu0
  %v505 = vadd.f32 %v365, %v504
  %v506 = vpop.f32.mrb[0].mxu0
  %v507 = vpop.f32.mrb[0].mxu0
  %v508 = vadd.f32 %v365, %v507
  %v509 = vpop.f32.mrb[0].mxu0
  %510 = vmatprep.mubr.bf16.mxu0 0
  %511 = vmatmul.mubr.bf16.gmra.mrb[0].mxu0 %v337
  %v512 = vpop.f32.mrb[0].mxu0
  %v513 = vadd.f32 %v365, %v512
  %v514 = vpop.f32.mrb[0].mxu0
  %v515 = vpop.f32.mrb[0].mxu0
  %v516 = vadd.f32 %v365, %v515
  %v517 = vpop.f32.mrb[0].mxu0
  %518 = vmatprep.mubr.bf16.mxu0 0
  %519 = vmatmul.mubr.bf16.gmra.mrb[0].mxu0 %v338
  %v520 = vpop.f32.mrb[0].mxu0
  %v521 = vadd.f32 %v365, %v520
  %v522 = vpop.f32.mrb[0].mxu0
  %v523 = vpop.f32.mrb[0].mxu0
  %v524 = vadd.f32 %v365, %v523
  %v525 = vpop.f32.mrb[0].mxu0
  %526 = vmatprep.mubr.bf16.mxu0 0
  %527 = vmatmul.mubr.bf16.gmra.mrb[0].mxu0 %v339
  %v528 = vpop.f32.mrb[0].mxu0
  %v529 = vadd.f32 %v365, %v528
  %v530 = vpop.f32.mrb[0].mxu0
  %v531 = vpop.f32.mrb[0].mxu0
  %v532 = vadd.f32 %v365, %v531
  %v533 = vpop.f32.mrb[0].mxu0
  %534 = vmatprep.mubr.bf16.mxu0 0
  %535 = vmatmul.mubr.bf16.gmra.mrb[0].mxu0 %v340
  %v536 = vpop.f32.mrb[0].mxu0
  %v537 = vadd.f32 %v365, %v536
  %v538 = vpop.f32.mrb[0].mxu0
  %v539 = vpop.f32.mrb[0].mxu0
  %v540 = vadd.f32 %v365, %v539
  %v541 = vpop.f32.mrb[0].mxu0
  %542 = vmatprep.mubr.bf16.mxu0 0
  %543 = vmatmul.mubr.bf16.gmra.mrb[0].mxu0 %v341
  %v544 = vpop.f32.mrb[0].mxu0
  %v545 = vadd.f32 %v365, %v544
  %v546 = vpop.f32.mrb[0].mxu0
  %v547 = vpop.f32.mrb[0].mxu0
  %v548 = vadd.f32 %v365, %v547
  %v549 = vpop.f32.mrb[0].mxu0
  %550 = vmatprep.mubr.bf16.mxu0 0
  %551 = vmatmul.mubr.bf16.gmra.mrb[0].mxu0 %v342
  %v552 = vpop.f32.mrb[0].mxu0
  %v553 = vadd.f32 %v365, %v552
  %v554 = vpop.f32.mrb[0].mxu0
  %v555 = vpop.f32.mrb[0].mxu0
  %v556 = vadd.f32 %v365, %v555
  %v557 = vpop.f32.mrb[0].mxu0
  %558 = vmatprep.mubr.bf16.mxu0 0
  %559 = vmatmul.mubr.bf16.gmra.mrb[0].mxu0 %v343
  %v560 = vpop.f32.mrb[0].mxu0
  %v561 = vadd.f32 %v365, %v560
  %v562 = vpop.f32.mrb[0].mxu0
  %v563 = vpop.f32.mrb[0].mxu0
  %v564 = vadd.f32 %v365, %v563
  %v565 = vpop.f32.mrb[0].mxu0
  %566 = vmatprep.mubr.bf16.mxu0 0
  %567 = vmatmul.mubr.bf16.gmra.mrb[0].mxu0 %v344
  %v568 = vpop.f32.mrb[0].mxu0
  %v569 = vadd.f32 %v365, %v568
  %v570 = vpop.f32.mrb[0].mxu0
  %v571 = vpop.f32.mrb[0].mxu0
  %v572 = vadd.f32 %v365, %v571
  %v573 = vpop.f32.mrb[0].mxu0
  %574 = vdwg.mxu0
  %v575 = vtanh.pop %v449
  %v576 = vtanh.pop %v452
  %v577 = vtanh.pop %v457
  %v578 = vtanh.pop %v460
  %v579 = vtanh.pop %v465
  %v580 = vtanh.pop %v468
  %v581 = vtanh.pop %v473
  %v582 = vtanh.pop %v476
  %v583 = vtanh.pop %v481
  %v584 = vtanh.pop %v484
  %v585 = vtanh.pop %v489
  %v586 = vtanh.pop %v492
  %v587 = vtanh.pop %v497
  %v588 = vtanh.pop %v500
  %v589 = vtanh.pop %v505
  %v590 = vtanh.pop %v508
  %v591 = vtanh.pop %v513
  %v592 = vtanh.pop %v516
  %v593 = vtanh.pop %v521
  %v594 = vtanh.pop %v524
  %v595 = vtanh.pop %v529
  %v596 = vtanh.pop %v532
  %v597 = vtanh.pop %v537
  %v598 = vtanh.pop %v540
  %v599 = vtanh.pop %v545
  %v600 = vtanh.pop %v548
  %v601 = vtanh.pop %v553
  %v602 = vtanh.pop %v556
  %v603 = vtanh.pop %v561
  %v604 = vtanh.pop %v564
  %v605 = vtanh.pop %v569
  %v606 = vtanh.pop %v572
  %v607 = vpack.c.bf16 %v576, %v575
  %v608 = vpack.c.bf16 %v578, %v577
  %v609 = vpack.c.bf16 %v580, %v579
  %v610 = vpack.c.bf16 %v582, %v581
  %v611 = vpack.c.bf16 %v584, %v583
  %v612 = vpack.c.bf16 %v586, %v585
  %v613 = vpack.c.bf16 %v588, %v587
  %v614 = vpack.c.bf16 %v590, %v589
  %v615 = vpack.c.bf16 %v592, %v591
  %v616 = vpack.c.bf16 %v594, %v593
  %v617 = vpack.c.bf16 %v596, %v595
  %v618 = vpack.c.bf16 %v598, %v597
  %v619 = vpack.c.bf16 %v600, %v599
  %v620 = vpack.c.bf16 %v602, %v601
  %v621 = vpack.c.bf16 %v604, %v603
  %v622 = vpack.c.bf16 %v606, %v605
  %s623 = scalar_lea.vmem %s2, 64
  %v624 = vld [vmem:[%s623] sm:$0xf]
  %v625 = vld [vmem:[%s623 + $0x4] sm:$0xf]
  %v626 = vld [vmem:[%s623 + $0x8] sm:$0xf]
  %v627 = vld [vmem:[%s623 + $0xc] sm:$0xf]
  %v628 = vld [vmem:[%s623 + $0x10] sm:$0xf]
  %v629 = vld [vmem:[%s623 + $0x14] sm:$0xf]
  %v630 = vld [vmem:[%s623 + $0x18] sm:$0xf]
  %v631 = vld [vmem:[%s623 + $0x1c] sm:$0xf]
  %v632 = vld [vmem:[%s623 + $0x20] sm:$0xf]
  %v633 = vld [vmem:[%s623 + $0x24] sm:$0xf]
  %v634 = vld [vmem:[%s623 + $0x28] sm:$0xf]
  %v635 = vld [vmem:[%s623 + $0x2c] sm:$0xf]
  %v636 = vld [vmem:[%s623 + $0x30] sm:$0xf]
  %v637 = vld [vmem:[%s623 + $0x34] sm:$0xf]
  %v638 = vld [vmem:[%s623 + $0x38] sm:$0xf]
  %v639 = vld [vmem:[%s623 + $0x3c] sm:$0xf]
  %v640 = vld [vmem:[%s3 + $0x2] sm:$0x1]
  %v641 = vlaneseq
  %v642 = vshrl.u32 %v641, 7
  %v643 = vsub.s32 0, %v642
  %v644 = vrot.slane %v640, %v643
  %v661 = vunpack.c.l.b16 %v624
  %v662 = vunpack.c.l.b16 %v625
  %v663 = vunpack.c.l.b16 %v626
  %v664 = vunpack.c.l.b16 %v627
  %v665 = vunpack.c.l.b16 %v628
  %v666 = vunpack.c.l.b16 %v629
  %v667 = vunpack.c.l.b16 %v630
  %v668 = vunpack.c.l.b16 %v631
  %v669 = vunpack.c.l.b16 %v632
  %v670 = vunpack.c.l.b16 %v633
  %v671 = vunpack.c.l.b16 %v634
  %v672 = vunpack.c.l.b16 %v635
  %v673 = vunpack.c.l.b16 %v636
  %v674 = vunpack.c.l.b16 %v637
  %v675 = vunpack.c.l.b16 %v638
  %v676 = vunpack.c.l.b16 %v639
  %v677 = vpack.c.b16 %v662, %v661
  %v678 = vpack.c.b16 %v664, %v663
  %v679 = vpack.c.b16 %v666, %v665
  %v680 = vpack.c.b16 %v668, %v667
  %v681 = vpack.c.b16 %v670, %v669
  %v682 = vpack.c.b16 %v672, %v671
  %v683 = vpack.c.b16 %v674, %v673
  %v684 = vpack.c.b16 %v676, %v675
  %693 = vmatprep.subr.bf16.mxu0 0
  %694 = vmatpush1.bf16.msra.mxu0 %v677
  %695 = vmatprep.subr.bf16.mxu0 0
  %696 = vmatpush1.bf16.msra.mxu0 %v678
  %697 = vmatprep.subr.bf16.mxu0 0
  %698 = vmatpush1.bf16.msra.mxu0 %v679
  %699 = vmatprep.subr.bf16.mxu0 0
  %700 = vmatpush1.bf16.msra.mxu0 %v680
  %701 = vmatprep.subr.bf16.mxu0 0
  %702 = vmatpush1.bf16.msra.mxu0 %v681
  %703 = vmatprep.subr.bf16.mxu0 0
  %704 = vmatpush1.bf16.msra.mxu0 %v682
  %705 = vmatprep.subr.bf16.mxu0 0
  %706 = vmatpush1.bf16.msra.mxu0 %v683
  %707 = vmatprep.subr.bf16.mxu0 0
  %708 = vmatpush1.bf16.msra.mxu0 %v684
  %709 = vmatprep.subr.bf16.mxu0 0
  %710 = vmatpush1.bf16.msra.mxu0 0
  %711 = vmatprep.subr.bf16.mxu0 0
  %712 = vmatpush1.bf16.msra.mxu0 0
  %713 = vmatprep.subr.bf16.mxu0 0
  %714 = vmatpush1.bf16.msra.mxu0 0
  %715 = vmatprep.subr.bf16.mxu0 0
  %716 = vmatpush1.bf16.msra.mxu0 0
  %717 = vmatprep.subr.bf16.mxu0 0
  %718 = vmatpush1.bf16.msra.mxu0 0
  %719 = vmatprep.subr.bf16.mxu0 0
  %720 = vmatpush1.bf16.msra.mxu0 0
  %721 = vmatprep.subr.bf16.mxu0 0
  %722 = vmatpush1.bf16.msra.mxu0 0
  %723 = vmatprep.subr.bf16.mxu0 0
  %724 = vmatpush1.bf16.msra.mxu0 0
  %725 = vmatprep.mubr.bf16.mxu0 0
  %726 = vmatmul.mubr.bf16.gmra.mrb[0].mxu0 %v607
  %v727 = vpop.f32.mrb[0].mxu0
  %v728 = vadd.f32 %v644, %v727
  %v729 = vpop.f32.mrb[0].mxu0
  %v730 = vpop.f32.mrb[0].mxu0
  %v731 = vadd.f32 %v644, %v730
  %v732 = vpop.f32.mrb[0].mxu0
  %733 = vmatprep.mubr.bf16.mxu0 0
  %734 = vmatmul.mubr.bf16.gmra.mrb[0].mxu0 %v608
  %v735 = vpop.f32.mrb[0].mxu0
  %v736 = vadd.f32 %v644, %v735
  %v737 = vpop.f32.mrb[0].mxu0
  %v738 = vpop.f32.mrb[0].mxu0
  %v739 = vadd.f32 %v644, %v738
  %v740 = vpop.f32.mrb[0].mxu0
  %741 = vmatprep.mubr.bf16.mxu0 0
  %742 = vmatmul.mubr.bf16.gmra.mrb[0].mxu0 %v609
  %v743 = vpop.f32.mrb[0].mxu0
  %v744 = vadd.f32 %v644, %v743
  %v745 = vpop.f32.mrb[0].mxu0
  %v746 = vpop.f32.mrb[0].mxu0
  %v747 = vadd.f32 %v644, %v746
  %v748 = vpop.f32.mrb[0].mxu0
  %749 = vmatprep.mubr.bf16.mxu0 0
  %750 = vmatmul.mubr.bf16.gmra.mrb[0].mxu0 %v610
  %v751 = vpop.f32.mrb[0].mxu0
  %v752 = vadd.f32 %v644, %v751
  %v753 = vpop.f32.mrb[0].mxu0
  %v754 = vpop.f32.mrb[0].mxu0
  %v755 = vadd.f32 %v644, %v754
  %v756 = vpop.f32.mrb[0].mxu0
  %757 = vmatprep.mubr.bf16.mxu0 0
  %758 = vmatmul.mubr.bf16.gmra.mrb[0].mxu0 %v611
  %v759 = vpop.f32.mrb[0].mxu0
  %v760 = vadd.f32 %v644, %v759
  %v761 = vpop.f32.mrb[0].mxu0
  %v762 = vpop.f32.mrb[0].mxu0
  %v763 = vadd.f32 %v644, %v762
  %v764 = vpop.f32.mrb[0].mxu0
  %765 = vmatprep.mubr.bf16.mxu0 0
  %766 = vmatmul.mubr.bf16.gmra.mrb[0].mxu0 %v612
  %v767 = vpop.f32.mrb[0].mxu0
  %v768 = vadd.f32 %v644, %v767
  %v769 = vpop.f32.mrb[0].mxu0
  %v770 = vpop.f32.mrb[0].mxu0
  %v771 = vadd.f32 %v644, %v770
  %v772 = vpop.f32.mrb[0].mxu0
  %773 = vmatprep.mubr.bf16.mxu0 0
  %774 = vmatmul.mubr.bf16.gmra.mrb[0].mxu0 %v613
  %v775 = vpop.f32.mrb[0].mxu0
  %v776 = vadd.f32 %v644, %v775
  %v777 = vpop.f32.mrb[0].mxu0
  %v778 = vpop.f32.mrb[0].mxu0
  %v779 = vadd.f32 %v644, %v778
  %v780 = vpop.f32.mrb[0].mxu0
  %781 = vmatprep.mubr.bf16.mxu0 0
  %782 = vmatmul.mubr.bf16.gmra.mrb[0].mxu0 %v614
  %v783 = vpop.f32.mrb[0].mxu0
  %v784 = vadd.f32 %v644, %v783
  %v785 = vpop.f32.mrb[0].mxu0
  %v786 = vpop.f32.mrb[0].mxu0
  %v787 = vadd.f32 %v644, %v786
  %v788 = vpop.f32.mrb[0].mxu0
  %789 = vmatprep.mubr.bf16.mxu0 0
  %790 = vmatmul.mubr.bf16.gmra.mrb[0].mxu0 %v615
  %v791 = vpop.f32.mrb[0].mxu0
  %v792 = vadd.f32 %v644, %v791
  %v793 = vpop.f32.mrb[0].mxu0
  %v794 = vpop.f32.mrb[0].mxu0
  %v795 = vadd.f32 %v644, %v794
  %v796 = vpop.f32.mrb[0].mxu0
  %797 = vmatprep.mubr.bf16.mxu0 0
  %798 = vmatmul.mubr.bf16.gmra.mrb[0].mxu0 %v616
  %v799 = vpop.f32.mrb[0].mxu0
  %v800 = vadd.f32 %v644, %v799
  %v801 = vpop.f32.mrb[0].mxu0
  %v802 = vpop.f32.mrb[0].mxu0
  %v803 = vadd.f32 %v644, %v802
  %v804 = vpop.f32.mrb[0].mxu0
  %805 = vmatprep.mubr.bf16.mxu0 0
  %806 = vmatmul.mubr.bf16.gmra.mrb[0].mxu0 %v617
  %v807 = vpop.f32.mrb[0].mxu0
  %v808 = vadd.f32 %v644, %v807
  %v809 = vpop.f32.mrb[0].mxu0
  %v810 = vpop.f32.mrb[0].mxu0
  %v811 = vadd.f32 %v644, %v810
  %v812 = vpop.f32.mrb[0].mxu0
  %813 = vmatprep.mubr.bf16.mxu0 0
  %814 = vmatmul.mubr.bf16.gmra.mrb[0].mxu0 %v618
  %v815 = vpop.f32.mrb[0].mxu0
  %v816 = vadd.f32 %v644, %v815
  %v817 = vpop.f32.mrb[0].mxu0
  %v818 = vpop.f32.mrb[0].mxu0
  %v819 = vadd.f32 %v644, %v818
  %v820 = vpop.f32.mrb[0].mxu0
  %821 = vmatprep.mubr.bf16.mxu0 0
  %822 = vmatmul.mubr.bf16.gmra.mrb[0].mxu0 %v619
  %v823 = vpop.f32.mrb[0].mxu0
  %v824 = vadd.f32 %v644, %v823
  %v825 = vpop.f32.mrb[0].mxu0
  %v826 = vpop.f32.mrb[0].mxu0
  %v827 = vadd.f32 %v644, %v826
  %v828 = vpop.f32.mrb[0].mxu0
  %829 = vmatprep.mubr.bf16.mxu0 0
  %830 = vmatmul.mubr.bf16.gmra.mrb[0].mxu0 %v620
  %v831 = vpop.f32.mrb[0].mxu0
  %v832 = vadd.f32 %v644, %v831
  %v833 = vpop.f32.mrb[0].mxu0
  %v834 = vpop.f32.mrb[0].mxu0
  %v835 = vadd.f32 %v644, %v834
  %v836 = vpop.f32.mrb[0].mxu0
  %837 = vmatprep.mubr.bf16.mxu0 0
  %838 = vmatmul.mubr.bf16.gmra.mrb[0].mxu0 %v621
  %v839 = vpop.f32.mrb[0].mxu0
  %v840 = vadd.f32 %v644, %v839
  %v841 = vpop.f32.mrb[0].mxu0
  %v842 = vpop.f32.mrb[0].mxu0
  %v843 = vadd.f32 %v644, %v842
  %v844 = vpop.f32.mrb[0].mxu0
  %845 = vmatprep.mubr.bf16.mxu0 0
  %846 = vmatmul.mubr.bf16.gmra.mrb[0].mxu0 %v622
  %v847 = vpop.f32.mrb[0].mxu0
  %v848 = vadd.f32 %v644, %v847
  %v849 = vpop.f32.mrb[0].mxu0
  %v850 = vpop.f32.mrb[0].mxu0
  %v851 = vadd.f32 %v644, %v850
  %v852 = vpop.f32.mrb[0].mxu0
  %853 = vdwg.mxu0
  %v854 = vtanh.pop %v728
  %v855 = vtanh.pop %v731
  %v856 = vtanh.pop %v736
  %v857 = vtanh.pop %v739
  %v858 = vtanh.pop %v744
  %v859 = vtanh.pop %v747
  %v860 = vtanh.pop %v752
  %v861 = vtanh.pop %v755
  %v862 = vtanh.pop %v760
  %v863 = vtanh.pop %v763
  %v864 = vtanh.pop %v768
  %v865 = vtanh.pop %v771
  %v866 = vtanh.pop %v776
  %v867 = vtanh.pop %v779
  %v868 = vtanh.pop %v784
  %v869 = vtanh.pop %v787
  %v870 = vtanh.pop %v792
  %v871 = vtanh.pop %v795
  %v872 = vtanh.pop %v800
  %v873 = vtanh.pop %v803
  %v874 = vtanh.pop %v808
  %v875 = vtanh.pop %v811
  %v876 = vtanh.pop %v816
  %v877 = vtanh.pop %v819
  %v878 = vtanh.pop %v824
  %v879 = vtanh.pop %v827
  %v880 = vtanh.pop %v832
  %v881 = vtanh.pop %v835
  %v882 = vtanh.pop %v840
  %v883 = vtanh.pop %v843
  %v884 = vtanh.pop %v848
  %v885 = vtanh.pop %v851
  %v886 = vpack.c.bf16 %v855, %v854
  %v887 = vpack.c.bf16 %v857, %v856
  %v888 = vpack.c.bf16 %v859, %v858
  %v889 = vpack.c.bf16 %v861, %v860
  %v890 = vpack.c.bf16 %v863, %v862
  %v891 = vpack.c.bf16 %v865, %v864
  %v892 = vpack.c.bf16 %v867, %v866
  %v893 = vpack.c.bf16 %v869, %v868
  %v894 = vpack.c.bf16 %v871, %v870
  %v895 = vpack.c.bf16 %v873, %v872
  %v896 = vpack.c.bf16 %v875, %v874
  %v897 = vpack.c.bf16 %v877, %v876
  %v898 = vpack.c.bf16 %v879, %v878
  %v899 = vpack.c.bf16 %v881, %v880
  %v900 = vpack.c.bf16 %v883, %v882
  %v901 = vpack.c.bf16 %v885, %v884
  %s902 = scalar_lea.vmem %s2, 128
  %v903 = vld [vmem:[%s902] sm:$0xf]
  %v904 = vld [vmem:[%s902 + $0x4] sm:$0xf]
  %v905 = vld [vmem:[%s902 + $0x8] sm:$0xf]
  %v906 = vld [vmem:[%s902 + $0xc] sm:$0xf]
  %v907 = vld [vmem:[%s902 + $0x10] sm:$0xf]
  %v908 = vld [vmem:[%s902 + $0x14] sm:$0xf]
  %v909 = vld [vmem:[%s902 + $0x18] sm:$0xf]
  %v910 = vld [vmem:[%s902 + $0x1c] sm:$0xf]
  %v911 = vld [vmem:[%s902 + $0x20] sm:$0xf]
  %v912 = vld [vmem:[%s902 + $0x24] sm:$0xf]
  %v913 = vld [vmem:[%s902 + $0x28] sm:$0xf]
  %v914 = vld [vmem:[%s902 + $0x2c] sm:$0xf]
  %v915 = vld [vmem:[%s902 + $0x30] sm:$0xf]
  %v916 = vld [vmem:[%s902 + $0x34] sm:$0xf]
  %v917 = vld [vmem:[%s902 + $0x38] sm:$0xf]
  %v918 = vld [vmem:[%s902 + $0x3c] sm:$0xf]
  %v919 = vld [vmem:[%s3 + $0x3] sm:$0x1]
  %v920 = vlaneseq
  %v921 = vshrl.u32 %v920, 7
  %v922 = vsub.s32 0, %v921
  %v923 = vrot.slane %v919, %v922
  %v940 = vunpack.c.l.b16 %v903
  %v941 = vunpack.c.l.b16 %v904
  %v942 = vunpack.c.l.b16 %v905
  %v943 = vunpack.c.l.b16 %v906
  %v944 = vunpack.c.l.b16 %v907
  %v945 = vunpack.c.l.b16 %v908
  %v946 = vunpack.c.l.b16 %v909
  %v947 = vunpack.c.l.b16 %v910
  %v948 = vunpack.c.l.b16 %v911
  %v949 = vunpack.c.l.b16 %v912
  %v950 = vunpack.c.l.b16 %v913
  %v951 = vunpack.c.l.b16 %v914
  %v952 = vunpack.c.l.b16 %v915
  %v953 = vunpack.c.l.b16 %v916
  %v954 = vunpack.c.l.b16 %v917
  %v955 = vunpack.c.l.b16 %v918
  %v956 = vpack.c.b16 %v941, %v940
  %v957 = vpack.c.b16 %v943, %v942
  %v958 = vpack.c.b16 %v945, %v944
  %v959 = vpack.c.b16 %v947, %v946
  %v960 = vpack.c.b16 %v949, %v948
  %v961 = vpack.c.b16 %v951, %v950
  %v962 = vpack.c.b16 %v953, %v952
  %v963 = vpack.c.b16 %v955, %v954
  %972 = vmatprep.subr.bf16.mxu0 0
  %973 = vmatpush1.bf16.msra.mxu0 %v956
  %974 = vmatprep.subr.bf16.mxu0 0
  %975 = vmatpush1.bf16.msra.mxu0 %v957
  %976 = vmatprep.subr.bf16.mxu0 0
  %977 = vmatpush1.bf16.msra.mxu0 %v958
  %978 = vmatprep.subr.bf16.mxu0 0
  %979 = vmatpush1.bf16.msra.mxu0 %v959
  %980 = vmatprep.subr.bf16.mxu0 0
  %981 = vmatpush1.bf16.msra.mxu0 %v960
  %982 = vmatprep.subr.bf16.mxu0 0
  %983 = vmatpush1.bf16.msra.mxu0 %v961
  %984 = vmatprep.subr.bf16.mxu0 0
  %985 = vmatpush1.bf16.msra.mxu0 %v962
  %986 = vmatprep.subr.bf16.mxu0 0
  %987 = vmatpush1.bf16.msra.mxu0 %v963
  %988 = vmatprep.subr.bf16.mxu0 0
  %989 = vmatpush1.bf16.msra.mxu0 0
  %990 = vmatprep.subr.bf16.mxu0 0
  %991 = vmatpush1.bf16.msra.mxu0 0
  %992 = vmatprep.subr.bf16.mxu0 0
  %993 = vmatpush1.bf16.msra.mxu0 0
  %994 = vmatprep.subr.bf16.mxu0 0
  %995 = vmatpush1.bf16.msra.mxu0 0
  %996 = vmatprep.subr.bf16.mxu0 0
  %997 = vmatpush1.bf16.msra.mxu0 0
  %998 = vmatprep.subr.bf16.mxu0 0
  %999 = vmatpush1.bf16.msra.mxu0 0
  %1000 = vmatprep.subr.bf16.mxu0 0
  %1001 = vmatpush1.bf16.msra.mxu0 0
  %1002 = vmatprep.subr.bf16.mxu0 0
  %1003 = vmatpush1.bf16.msra.mxu0 0
  %1004 = vmatprep.mubr.bf16.mxu0 0
  %1005 = vmatmul.mubr.bf16.gmra.mrb[0].mxu0 %v886
  %v1006 = vpop.f32.mrb[0].mxu0
  %v1007 = vadd.f32 %v923, %v1006
  %v1008 = vpop.f32.mrb[0].mxu0
  %v1009 = vpop.f32.mrb[0].mxu0
  %v1010 = vadd.f32 %v923, %v1009
  %v1011 = vpop.f32.mrb[0].mxu0
  %1012 = vmatprep.mubr.bf16.mxu0 0
  %1013 = vmatmul.mubr.bf16.gmra.mrb[0].mxu0 %v887
  %v1014 = vpop.f32.mrb[0].mxu0
  %v1015 = vadd.f32 %v923, %v1014
  %v1016 = vpop.f32.mrb[0].mxu0
  %v1017 = vpop.f32.mrb[0].mxu0
  %v1018 = vadd.f32 %v923, %v1017
  %v1019 = vpop.f32.mrb[0].mxu0
  %1020 = vmatprep.mubr.bf16.mxu0 0
  %1021 = vmatmul.mubr.bf16.gmra.mrb[0].mxu0 %v888
  %v1022 = vpop.f32.mrb[0].mxu0
  %v1023 = vadd.f32 %v923, %v1022
  %v1024 = vpop.f32.mrb[0].mxu0
  %v1025 = vpop.f32.mrb[0].mxu0
  %v1026 = vadd.f32 %v923, %v1025
  %v1027 = vpop.f32.mrb[0].mxu0
  %1028 = vmatprep.mubr.bf16.mxu0 0
  %1029 = vmatmul.mubr.bf16.gmra.mrb[0].mxu0 %v889
  %v1030 = vpop.f32.mrb[0].mxu0
  %v1031 = vadd.f32 %v923, %v1030
  %v1032 = vpop.f32.mrb[0].mxu0
  %v1033 = vpop.f32.mrb[0].mxu0
  %v1034 = vadd.f32 %v923, %v1033
  %v1035 = vpop.f32.mrb[0].mxu0
  %1036 = vmatprep.mubr.bf16.mxu0 0
  %1037 = vmatmul.mubr.bf16.gmra.mrb[0].mxu0 %v890
  %v1038 = vpop.f32.mrb[0].mxu0
  %v1039 = vadd.f32 %v923, %v1038
  %v1040 = vpop.f32.mrb[0].mxu0
  %v1041 = vpop.f32.mrb[0].mxu0
  %v1042 = vadd.f32 %v923, %v1041
  %v1043 = vpop.f32.mrb[0].mxu0
  %1044 = vmatprep.mubr.bf16.mxu0 0
  %1045 = vmatmul.mubr.bf16.gmra.mrb[0].mxu0 %v891
  %v1046 = vpop.f32.mrb[0].mxu0
  %v1047 = vadd.f32 %v923, %v1046
  %v1048 = vpop.f32.mrb[0].mxu0
  %v1049 = vpop.f32.mrb[0].mxu0
  %v1050 = vadd.f32 %v923, %v1049
  %v1051 = vpop.f32.mrb[0].mxu0
  %1052 = vmatprep.mubr.bf16.mxu0 0
  %1053 = vmatmul.mubr.bf16.gmra.mrb[0].mxu0 %v892
  %v1054 = vpop.f32.mrb[0].mxu0
  %v1055 = vadd.f32 %v923, %v1054
  %v1056 = vpop.f32.mrb[0].mxu0
  %v1057 = vpop.f32.mrb[0].mxu0
  %v1058 = vadd.f32 %v923, %v1057
  %v1059 = vpop.f32.mrb[0].mxu0
  %1060 = vmatprep.mubr.bf16.mxu0 0
  %1061 = vmatmul.mubr.bf16.gmra.mrb[0].mxu0 %v893
  %v1062 = vpop.f32.mrb[0].mxu0
  %v1063 = vadd.f32 %v923, %v1062
  %v1064 = vpop.f32.mrb[0].mxu0
  %v1065 = vpop.f32.mrb[0].mxu0
  %v1066 = vadd.f32 %v923, %v1065
  %v1067 = vpop.f32.mrb[0].mxu0
  %1068 = vmatprep.mubr.bf16.mxu0 0
  %1069 = vmatmul.mubr.bf16.gmra.mrb[0].mxu0 %v894
  %v1070 = vpop.f32.mrb[0].mxu0
  %v1071 = vadd.f32 %v923, %v1070
  %v1072 = vpop.f32.mrb[0].mxu0
  %v1073 = vpop.f32.mrb[0].mxu0
  %v1074 = vadd.f32 %v923, %v1073
  %v1075 = vpop.f32.mrb[0].mxu0
  %1076 = vmatprep.mubr.bf16.mxu0 0
  %1077 = vmatmul.mubr.bf16.gmra.mrb[0].mxu0 %v895
  %v1078 = vpop.f32.mrb[0].mxu0
  %v1079 = vadd.f32 %v923, %v1078
  %v1080 = vpop.f32.mrb[0].mxu0
  %v1081 = vpop.f32.mrb[0].mxu0
  %v1082 = vadd.f32 %v923, %v1081
  %v1083 = vpop.f32.mrb[0].mxu0
  %1084 = vmatprep.mubr.bf16.mxu0 0
  %1085 = vmatmul.mubr.bf16.gmra.mrb[0].mxu0 %v896
  %v1086 = vpop.f32.mrb[0].mxu0
  %v1087 = vadd.f32 %v923, %v1086
  %v1088 = vpop.f32.mrb[0].mxu0
  %v1089 = vpop.f32.mrb[0].mxu0
  %v1090 = vadd.f32 %v923, %v1089
  %v1091 = vpop.f32.mrb[0].mxu0
  %1092 = vmatprep.mubr.bf16.mxu0 0
  %1093 = vmatmul.mubr.bf16.gmra.mrb[0].mxu0 %v897
  %v1094 = vpop.f32.mrb[0].mxu0
  %v1095 = vadd.f32 %v923, %v1094
  %v1096 = vpop.f32.mrb[0].mxu0
  %v1097 = vpop.f32.mrb[0].mxu0
  %v1098 = vadd.f32 %v923, %v1097
  %v1099 = vpop.f32.mrb[0].mxu0
  %1100 = vmatprep.mubr.bf16.mxu0 0
  %1101 = vmatmul.mubr.bf16.gmra.mrb[0].mxu0 %v898
  %v1102 = vpop.f32.mrb[0].mxu0
  %v1103 = vadd.f32 %v923, %v1102
  %v1104 = vpop.f32.mrb[0].mxu0
  %v1105 = vpop.f32.mrb[0].mxu0
  %v1106 = vadd.f32 %v923, %v1105
  %v1107 = vpop.f32.mrb[0].mxu0
  %1108 = vmatprep.mubr.bf16.mxu0 0
  %1109 = vmatmul.mubr.bf16.gmra.mrb[0].mxu0 %v899
  %v1110 = vpop.f32.mrb[0].mxu0
  %v1111 = vadd.f32 %v923, %v1110
  %v1112 = vpop.f32.mrb[0].mxu0
  %v1113 = vpop.f32.mrb[0].mxu0
  %v1114 = vadd.f32 %v923, %v1113
  %v1115 = vpop.f32.mrb[0].mxu0
  %1116 = vmatprep.mubr.bf16.mxu0 0
  %1117 = vmatmul.mubr.bf16.gmra.mrb[0].mxu0 %v900
  %v1118 = vpop.f32.mrb[0].mxu0
  %v1119 = vadd.f32 %v923, %v1118
  %v1120 = vpop.f32.mrb[0].mxu0
  %v1121 = vpop.f32.mrb[0].mxu0
  %v1122 = vadd.f32 %v923, %v1121
  %v1123 = vpop.f32.mrb[0].mxu0
  %1124 = vmatprep.mubr.bf16.mxu0 0
  %1125 = vmatmul.mubr.bf16.gmra.mrb[0].mxu0 %v901
  %v1126 = vpop.f32.mrb[0].mxu0
  %v1127 = vadd.f32 %v923, %v1126
  %v1128 = vpop.f32.mrb[0].mxu0
  %v1129 = vpop.f32.mrb[0].mxu0
  %v1130 = vadd.f32 %v923, %v1129
  %v1131 = vpop.f32.mrb[0].mxu0
  %1132 = vdwg.mxu0
  %v1133 = vtanh.pop %v1007
  %v1134 = vtanh.pop %v1010
  %v1135 = vtanh.pop %v1015
  %v1136 = vtanh.pop %v1018
  %v1137 = vtanh.pop %v1023
  %v1138 = vtanh.pop %v1026
  %v1139 = vtanh.pop %v1031
  %v1140 = vtanh.pop %v1034
  %v1141 = vtanh.pop %v1039
  %v1142 = vtanh.pop %v1042
  %v1143 = vtanh.pop %v1047
  %v1144 = vtanh.pop %v1050
  %v1145 = vtanh.pop %v1055
  %v1146 = vtanh.pop %v1058
  %v1147 = vtanh.pop %v1063
  %v1148 = vtanh.pop %v1066
  %v1149 = vtanh.pop %v1071
  %v1150 = vtanh.pop %v1074
  %v1151 = vtanh.pop %v1079
  %v1152 = vtanh.pop %v1082
  %v1153 = vtanh.pop %v1087
  %v1154 = vtanh.pop %v1090
  %v1155 = vtanh.pop %v1095
  %v1156 = vtanh.pop %v1098
  %v1157 = vtanh.pop %v1103
  %v1158 = vtanh.pop %v1106
  %v1159 = vtanh.pop %v1111
  %v1160 = vtanh.pop %v1114
  %v1161 = vtanh.pop %v1119
  %v1162 = vtanh.pop %v1122
  %v1163 = vtanh.pop %v1127
  %v1164 = vtanh.pop %v1130
  %v1165 = vpack.c.bf16 %v1134, %v1133
  %v1166 = vpack.c.bf16 %v1136, %v1135
  %v1167 = vpack.c.bf16 %v1138, %v1137
  %v1168 = vpack.c.bf16 %v1140, %v1139
  %v1169 = vpack.c.bf16 %v1142, %v1141
  %v1170 = vpack.c.bf16 %v1144, %v1143
  %v1171 = vpack.c.bf16 %v1146, %v1145
  %v1172 = vpack.c.bf16 %v1148, %v1147
  %v1173 = vpack.c.bf16 %v1150, %v1149
  %v1174 = vpack.c.bf16 %v1152, %v1151
  %v1175 = vpack.c.bf16 %v1154, %v1153
  %v1176 = vpack.c.bf16 %v1156, %v1155
  %v1177 = vpack.c.bf16 %v1158, %v1157
  %v1178 = vpack.c.bf16 %v1160, %v1159
  %v1179 = vpack.c.bf16 %v1162, %v1161
  %v1180 = vpack.c.bf16 %v1164, %v1163
  %s1181 = scalar_lea.vmem %s2, 192
  %v1182 = vld [vmem:[%s1181] sm:$0xf]
  %v1183 = vld [vmem:[%s1181 + $0x4] sm:$0xf]
  %v1184 = vld [vmem:[%s1181 + $0x8] sm:$0xf]
  %v1185 = vld [vmem:[%s1181 + $0xc] sm:$0xf]
  %v1186 = vld [vmem:[%s1181 + $0x10] sm:$0xf]
  %v1187 = vld [vmem:[%s1181 + $0x14] sm:$0xf]
  %v1188 = vld [vmem:[%s1181 + $0x18] sm:$0xf]
  %v1189 = vld [vmem:[%s1181 + $0x1c] sm:$0xf]
  %v1190 = vld [vmem:[%s1181 + $0x20] sm:$0xf]
  %v1191 = vld [vmem:[%s1181 + $0x24] sm:$0xf]
  %v1192 = vld [vmem:[%s1181 + $0x28] sm:$0xf]
  %v1193 = vld [vmem:[%s1181 + $0x2c] sm:$0xf]
  %v1194 = vld [vmem:[%s1181 + $0x30] sm:$0xf]
  %v1195 = vld [vmem:[%s1181 + $0x34] sm:$0xf]
  %v1196 = vld [vmem:[%s1181 + $0x38] sm:$0xf]
  %v1197 = vld [vmem:[%s1181 + $0x3c] sm:$0xf]
  %v1198 = vld [vmem:[%s3 + $0x4] sm:$0x1]
  %v1199 = vlaneseq
  %v1200 = vshrl.u32 %v1199, 7
  %v1201 = vsub.s32 0, %v1200
  %v1202 = vrot.slane %v1198, %v1201
  %v1219 = vunpack.c.l.b16 %v1182
  %v1220 = vunpack.c.l.b16 %v1183
  %v1221 = vunpack.c.l.b16 %v1184
  %v1222 = vunpack.c.l.b16 %v1185
  %v1223 = vunpack.c.l.b16 %v1186
  %v1224 = vunpack.c.l.b16 %v1187
  %v1225 = vunpack.c.l.b16 %v1188
  %v1226 = vunpack.c.l.b16 %v1189
  %v1227 = vunpack.c.l.b16 %v1190
  %v1228 = vunpack.c.l.b16 %v1191
  %v1229 = vunpack.c.l.b16 %v1192
  %v1230 = vunpack.c.l.b16 %v1193
  %v1231 = vunpack.c.l.b16 %v1194
  %v1232 = vunpack.c.l.b16 %v1195
  %v1233 = vunpack.c.l.b16 %v1196
  %v1234 = vunpack.c.l.b16 %v1197
  %v1235 = vpack.c.b16 %v1220, %v1219
  %v1236 = vpack.c.b16 %v1222, %v1221
  %v1237 = vpack.c.b16 %v1224, %v1223
  %v1238 = vpack.c.b16 %v1226, %v1225
  %v1239 = vpack.c.b16 %v1228, %v1227
  %v1240 = vpack.c.b16 %v1230, %v1229
  %v1241 = vpack.c.b16 %v1232, %v1231
  %v1242 = vpack.c.b16 %v1234, %v1233
  %1251 = vmatprep.subr.bf16.mxu0 0
  %1252 = vmatpush1.bf16.msra.mxu0 %v1235
  %1253 = vmatprep.subr.bf16.mxu0 0
  %1254 = vmatpush1.bf16.msra.mxu0 %v1236
  %1255 = vmatprep.subr.bf16.mxu0 0
  %1256 = vmatpush1.bf16.msra.mxu0 %v1237
  %1257 = vmatprep.subr.bf16.mxu0 0
  %1258 = vmatpush1.bf16.msra.mxu0 %v1238
  %1259 = vmatprep.subr.bf16.mxu0 0
  %1260 = vmatpush1.bf16.msra.mxu0 %v1239
  %1261 = vmatprep.subr.bf16.mxu0 0
  %1262 = vmatpush1.bf16.msra.mxu0 %v1240
  %1263 = vmatprep.subr.bf16.mxu0 0
  %1264 = vmatpush1.bf16.msra.mxu0 %v1241
  %1265 = vmatprep.subr.bf16.mxu0 0
  %1266 = vmatpush1.bf16.msra.mxu0 %v1242
  %1267 = vmatprep.subr.bf16.mxu0 0
  %1268 = vmatpush1.bf16.msra.mxu0 0
  %1269 = vmatprep.subr.bf16.mxu0 0
  %1270 = vmatpush1.bf16.msra.mxu0 0
  %1271 = vmatprep.subr.bf16.mxu0 0
  %1272 = vmatpush1.bf16.msra.mxu0 0
  %1273 = vmatprep.subr.bf16.mxu0 0
  %1274 = vmatpush1.bf16.msra.mxu0 0
  %1275 = vmatprep.subr.bf16.mxu0 0
  %1276 = vmatpush1.bf16.msra.mxu0 0
  %1277 = vmatprep.subr.bf16.mxu0 0
  %1278 = vmatpush1.bf16.msra.mxu0 0
  %1279 = vmatprep.subr.bf16.mxu0 0
  %1280 = vmatpush1.bf16.msra.mxu0 0
  %1281 = vmatprep.subr.bf16.mxu0 0
  %1282 = vmatpush1.bf16.msra.mxu0 0
  %1283 = vmatprep.mubr.bf16.mxu0 0
  %1284 = vmatmul.mubr.bf16.gmra.mrb[0].mxu0 %v1165
  %v1285 = vpop.f32.mrb[0].mxu0
  %v1286 = vadd.f32 %v1202, %v1285
  %v1287 = vpop.f32.mrb[0].mxu0
  %v1288 = vpop.f32.mrb[0].mxu0
  %v1289 = vadd.f32 %v1202, %v1288
  %v1290 = vpop.f32.mrb[0].mxu0
  %1291 = vmatprep.mubr.bf16.mxu0 0
  %1292 = vmatmul.mubr.bf16.gmra.mrb[0].mxu0 %v1166
  %v1293 = vpop.f32.mrb[0].mxu0
  %v1294 = vadd.f32 %v1202, %v1293
  %v1295 = vpop.f32.mrb[0].mxu0
  %v1296 = vpop.f32.mrb[0].mxu0
  %v1297 = vadd.f32 %v1202, %v1296
  %v1298 = vpop.f32.mrb[0].mxu0
  %1299 = vmatprep.mubr.bf16.mxu0 0
  %1300 = vmatmul.mubr.bf16.gmra.mrb[0].mxu0 %v1167
  %v1301 = vpop.f32.mrb[0].mxu0
  %v1302 = vadd.f32 %v1202, %v1301
  %v1303 = vpop.f32.mrb[0].mxu0
  %v1304 = vpop.f32.mrb[0].mxu0
  %v1305 = vadd.f32 %v1202, %v1304
  %v1306 = vpop.f32.mrb[0].mxu0
  %1307 = vmatprep.mubr.bf16.mxu0 0
  %1308 = vmatmul.mubr.bf16.gmra.mrb[0].mxu0 %v1168
  %v1309 = vpop.f32.mrb[0].mxu0
  %v1310 = vadd.f32 %v1202, %v1309
  %v1311 = vpop.f32.mrb[0].mxu0
  %v1312 = vpop.f32.mrb[0].mxu0
  %v1313 = vadd.f32 %v1202, %v1312
  %v1314 = vpop.f32.mrb[0].mxu0
  %1315 = vmatprep.mubr.bf16.mxu0 0
  %1316 = vmatmul.mubr.bf16.gmra.mrb[0].mxu0 %v1169
  %v1317 = vpop.f32.mrb[0].mxu0
  %v1318 = vadd.f32 %v1202, %v1317
  %v1319 = vpop.f32.mrb[0].mxu0
  %v1320 = vpop.f32.mrb[0].mxu0
  %v1321 = vadd.f32 %v1202, %v1320
  %v1322 = vpop.f32.mrb[0].mxu0
  %1323 = vmatprep.mubr.bf16.mxu0 0
  %1324 = vmatmul.mubr.bf16.gmra.mrb[0].mxu0 %v1170
  %v1325 = vpop.f32.mrb[0].mxu0
  %v1326 = vadd.f32 %v1202, %v1325
  %v1327 = vpop.f32.mrb[0].mxu0
  %v1328 = vpop.f32.mrb[0].mxu0
  %v1329 = vadd.f32 %v1202, %v1328
  %v1330 = vpop.f32.mrb[0].mxu0
  %1331 = vmatprep.mubr.bf16.mxu0 0
  %1332 = vmatmul.mubr.bf16.gmra.mrb[0].mxu0 %v1171
  %v1333 = vpop.f32.mrb[0].mxu0
  %v1334 = vadd.f32 %v1202, %v1333
  %v1335 = vpop.f32.mrb[0].mxu0
  %v1336 = vpop.f32.mrb[0].mxu0
  %v1337 = vadd.f32 %v1202, %v1336
  %v1338 = vpop.f32.mrb[0].mxu0
  %1339 = vmatprep.mubr.bf16.mxu0 0
  %1340 = vmatmul.mubr.bf16.gmra.mrb[0].mxu0 %v1172
  %v1341 = vpop.f32.mrb[0].mxu0
  %v1342 = vadd.f32 %v1202, %v1341
  %v1343 = vpop.f32.mrb[0].mxu0
  %v1344 = vpop.f32.mrb[0].mxu0
  %v1345 = vadd.f32 %v1202, %v1344
  %v1346 = vpop.f32.mrb[0].mxu0
  %1347 = vmatprep.mubr.bf16.mxu0 0
  %1348 = vmatmul.mubr.bf16.gmra.mrb[0].mxu0 %v1173
  %v1349 = vpop.f32.mrb[0].mxu0
  %v1350 = vadd.f32 %v1202, %v1349
  %v1351 = vpop.f32.mrb[0].mxu0
  %v1352 = vpop.f32.mrb[0].mxu0
  %v1353 = vadd.f32 %v1202, %v1352
  %v1354 = vpop.f32.mrb[0].mxu0
  %1355 = vmatprep.mubr.bf16.mxu0 0
  %1356 = vmatmul.mubr.bf16.gmra.mrb[0].mxu0 %v1174
  %v1357 = vpop.f32.mrb[0].mxu0
  %v1358 = vadd.f32 %v1202, %v1357
  %v1359 = vpop.f32.mrb[0].mxu0
  %v1360 = vpop.f32.mrb[0].mxu0
  %v1361 = vadd.f32 %v1202, %v1360
  %v1362 = vpop.f32.mrb[0].mxu0
  %1363 = vmatprep.mubr.bf16.mxu0 0
  %1364 = vmatmul.mubr.bf16.gmra.mrb[0].mxu0 %v1175
  %v1365 = vpop.f32.mrb[0].mxu0
  %v1366 = vadd.f32 %v1202, %v1365
  %v1367 = vpop.f32.mrb[0].mxu0
  %v1368 = vpop.f32.mrb[0].mxu0
  %v1369 = vadd.f32 %v1202, %v1368
  %v1370 = vpop.f32.mrb[0].mxu0
  %1371 = vmatprep.mubr.bf16.mxu0 0
  %1372 = vmatmul.mubr.bf16.gmra.mrb[0].mxu0 %v1176
  %v1373 = vpop.f32.mrb[0].mxu0
  %v1374 = vadd.f32 %v1202, %v1373
  %v1375 = vpop.f32.mrb[0].mxu0
  %v1376 = vpop.f32.mrb[0].mxu0
  %v1377 = vadd.f32 %v1202, %v1376
  %v1378 = vpop.f32.mrb[0].mxu0
  %1379 = vmatprep.mubr.bf16.mxu0 0
  %1380 = vmatmul.mubr.bf16.gmra.mrb[0].mxu0 %v1177
  %v1381 = vpop.f32.mrb[0].mxu0
  %v1382 = vadd.f32 %v1202, %v1381
  %v1383 = vpop.f32.mrb[0].mxu0
  %v1384 = vpop.f32.mrb[0].mxu0
  %v1385 = vadd.f32 %v1202, %v1384
  %v1386 = vpop.f32.mrb[0].mxu0
  %1387 = vmatprep.mubr.bf16.mxu0 0
  %1388 = vmatmul.mubr.bf16.gmra.mrb[0].mxu0 %v1178
  %v1389 = vpop.f32.mrb[0].mxu0
  %v1390 = vadd.f32 %v1202, %v1389
  %v1391 = vpop.f32.mrb[0].mxu0
  %v1392 = vpop.f32.mrb[0].mxu0
  %v1393 = vadd.f32 %v1202, %v1392
  %v1394 = vpop.f32.mrb[0].mxu0
  %1395 = vmatprep.mubr.bf16.mxu0 0
  %1396 = vmatmul.mubr.bf16.gmra.mrb[0].mxu0 %v1179
  %v1397 = vpop.f32.mrb[0].mxu0
  %v1398 = vadd.f32 %v1202, %v1397
  %v1399 = vpop.f32.mrb[0].mxu0
  %v1400 = vpop.f32.mrb[0].mxu0
  %v1401 = vadd.f32 %v1202, %v1400
  %v1402 = vpop.f32.mrb[0].mxu0
  %1403 = vmatprep.mubr.bf16.mxu0 0
  %1404 = vmatmul.mubr.bf16.gmra.mrb[0].mxu0 %v1180
  %v1405 = vpop.f32.mrb[0].mxu0
  %v1406 = vadd.f32 %v1202, %v1405
  %v1407 = vpop.f32.mrb[0].mxu0
  %v1408 = vpop.f32.mrb[0].mxu0
  %v1409 = vadd.f32 %v1202, %v1408
  %v1410 = vpop.f32.mrb[0].mxu0
  %1411 = vdwg.mxu0
  %1412 = vst [vmem:[%s4] sm:$0xff] %v1286
  %1413 = vst [vmem:[%s4 + $0x8] sm:$0xff] %v1289
  %1414 = vst [vmem:[%s4 + $0x10] sm:$0xff] %v1294
  %1415 = vst [vmem:[%s4 + $0x18] sm:$0xff] %v1297
  %1416 = vst [vmem:[%s4 + $0x20] sm:$0xff] %v1302
  %1417 = vst [vmem:[%s4 + $0x28] sm:$0xff] %v1305
  %1418 = vst [vmem:[%s4 + $0x30] sm:$0xff] %v1310
  %1419 = vst [vmem:[%s4 + $0x38] sm:$0xff] %v1313
  %1420 = vst [vmem:[%s4 + $0x40] sm:$0xff] %v1318
  %1421 = vst [vmem:[%s4 + $0x48] sm:$0xff] %v1321
  %1422 = vst [vmem:[%s4 + $0x50] sm:$0xff] %v1326
  %1423 = vst [vmem:[%s4 + $0x58] sm:$0xff] %v1329
  %1424 = vst [vmem:[%s4 + $0x60] sm:$0xff] %v1334
  %1425 = vst [vmem:[%s4 + $0x68] sm:$0xff] %v1337
  %1426 = vst [vmem:[%s4 + $0x70] sm:$0xff] %v1342
  %1427 = vst [vmem:[%s4 + $0x78] sm:$0xff] %v1345
  %1428 = vst [vmem:[%s4 + $0x80] sm:$0xff] %v1350
  %1429 = vst [vmem:[%s4 + $0x88] sm:$0xff] %v1353
  %1430 = vst [vmem:[%s4 + $0x90] sm:$0xff] %v1358
  %1431 = vst [vmem:[%s4 + $0x98] sm:$0xff] %v1361
  %1432 = vst [vmem:[%s4 + $0xa0] sm:$0xff] %v1366
  %1433 = vst [vmem:[%s4 + $0xa8] sm:$0xff] %v1369
  %1434 = vst [vmem:[%s4 + $0xb0] sm:$0xff] %v1374
  %1435 = vst [vmem:[%s4 + $0xb8] sm:$0xff] %v1377
  %1436 = vst [vmem:[%s4 + $0xc0] sm:$0xff] %v1382
  %1437 = vst [vmem:[%s4 + $0xc8] sm:$0xff] %v1385
  %1438 = vst [vmem:[%s4 + $0xd0] sm:$0xff] %v1390
  %1439 = vst [vmem:[%s4 + $0xd8] sm:$0xff] %v1393
  %1440 = vst [vmem:[%s4 + $0xe0] sm:$0xff] %v1398
  %1441 = vst [vmem:[%s4 + $0xe8] sm:$0xff] %v1401
  %1442 = vst [vmem:[%s4 + $0xf0] sm:$0xff] %v1406
  %1443 = vst [vmem:[%s4 + $0xf8] sm:$0xff] %v1409
  // Predicated region
  $region18: #{generator_forward.1} parent=0 // pred_check
    _
  $region19: #{generator_forward.1} parent=0 // pred_check_branch
    %1445 = sbr.rel (0) target = $region21
  $region20: #{generator_forward.1} parent=0 // pred_region
    _
  $region21: #{generator_forward.1} parent=0 // pred_fallthru
    _
  // Predicated region
  $region22: #{generator_forward.1} parent=0 // pred_check
    _
  $region23: #{generator_forward.1} parent=0 // pred_check_branch
    %1447 = sbr.rel (0) target = $region25
  $region24: #{generator_forward.1} parent=0 // pred_region
    _
  $region25: #{generator_forward.1} parent=0 // pred_fallthru
    _

</llo_original>
